<compile_context>
chip_gen: v5e
topology: v5e:2x2
jax: 0.10.0
libtpu: 0.0.40
codegen_flags: <defaults>
</compile_context>

<pallas_src>
import jax
import jax.numpy as jnp
from jax import lax
from jax.experimental import pallas as pl
from jax.experimental.pallas import tpu as pltpu


# ---------------------------------------------------------------------------
# Single fused Pallas kernel (one batch image per grid step)
# ---------------------------------------------------------------------------

def _decoder_fused_kernel(x_ref, sk_ref, wup_ref, bup_ref, eu_ref, es_ref,
                          bc_ref, o_ref, up_pad):
    # x_ref   : (1, H*W, Cin)        input, channels-last, rows flattened
    # sk_ref  : (1, H+2, W+2, 4*C)   skip, parity-packed + 1-px zero halo
    # wup_ref : (Cin, 4*C)           ConvTranspose2d weight packed (di,dj,oc fastest)
    # bup_ref : (1, 4*C)             ConvTranspose2d bias tiled over the 4 parities
    # eu_ref  : (9, 4*C, 4*C)        expanded conv weights, up path   (tap-major)
    # es_ref  : (9, 4*C, 4*C)        expanded conv weights, skip path (tap-major)
    # bc_ref  : (1, 4*C)             conv bias tiled over the 4 parities
    # o_ref   : (1, H*W, 4*C)        output, parity-packed
    # up_pad  : (H+2, W+2, 4*C)      VMEM scratch (haloed upsample result)
    hp, wp, cpk = up_pad.shape
    ho, wo = hp - 2, wp - 2

    # 1) Transposed conv == one MXU matmul; the weight packing makes the result
    #    land directly in the parity-packed layout (pixel shuffle is free).
    up = jnp.dot(x_ref[0], wup_ref[...], preferred_element_type=jnp.float32)
    up = up + bup_ref[...]

    # 2) Stage it with a 1-pixel zero halo so the 3x3 stencil needs no masks.
    #    Zeroed every grid step: with "parallel" batch semantics each core must
    #    see an initialised halo, so a first-iteration-only init is unsafe.
    up_pad[...] = jnp.zeros(up_pad.shape, up_pad.dtype)
    up_pad[1:ho + 1, 1:wo + 1, :] = up.reshape(ho, wo, cpk)

    sk = sk_ref.at[0]                    # (H+2, W+2, 4C) Ref view, no load yet

    # 3) 3x3 conv (pad=1) in the packed domain: 9 shifted windows, two matmuls
    #    each (up path + skip path), K = N = 4*Cout.  Bias pre-loaded into the
    #    accumulator; accumulator kept in the exact store layout (H*W, 4*C).
    acc = jnp.broadcast_to(bc_ref[...], (ho * wo, cpk))
    for kr in range(3):                  # statically unrolled stencil
        for kc in range(3):
            k = kr * 3 + kc
            u = up_pad[kr:kr + ho, kc:kc + wo, :].reshape(ho * wo, cpk)
            s = sk[kr:kr + ho, kc:kc + wo, :].reshape(ho * wo, cpk)
            acc = acc + jnp.dot(u, eu_ref[k], preferred_element_type=jnp.float32)
            acc = acc + jnp.dot(s, es_ref[k], preferred_element_type=jnp.float32)

    o_ref[0] = jnp.maximum(acc, 0.0)


# ---------------------------------------------------------------------------
# Trace-time weight expansion: full-res 3x3 conv -> packed-domain 3x3 conv
# ---------------------------------------------------------------------------

def _expand_conv_weight(w_kkco):
    """w_kkco: (3, 3, C, C) [ky, kx, cin, cout] acting on one half of the
    full-resolution concatenated image.  Returns (9, 4C, 4C) tap-major weights
    for the equivalent 3x3 conv on the parity-packed low-resolution tensor."""
    C = w_kkco.shape[-1]
    E = jnp.zeros((3, 3, 4 * C, 4 * C), w_kkco.dtype)
    for dr in (-1, 0, 1):
        for pa in (0, 1):
            for ay in (0, 1):
                ky = 2 * dr + pa + 1 - ay        # full-res tap row for this combo
                if not 0 <= ky <= 2:
                    continue
                for dc in (-1, 0, 1):
                    for pb in (0, 1):
                        for by in (0, 1):
                            kx = 2 * dc + pb + 1 - by
                            if not 0 <= kx <= 2:
                                continue
                            ri = (2 * pa + pb) * C       # packed input block
                            co = (2 * ay + by) * C       # packed output block
                            E = E.at[dr + 1, dc + 1,
                                     ri:ri + C, co:co + C].set(w_kkco[ky, kx])
    return E.reshape(9, 4 * C, 4 * C)


# ---------------------------------------------------------------------------
# Forward wrapper (PyTorch NCHW I/O)
# ---------------------------------------------------------------------------

def decoder_block_forward(x_nchw, skip_nchw, params):
    """Matches decoderBlock.forward(inputs, skip)."""
    n, cin, h, w = x_nchw.shape
    cout = params["up_b"].shape[0]
    cpk = 4 * cout

    # ---- boundary layout plumbing (XLA; an NCHW module needs a transpose anyway) ----
    x2 = jnp.transpose(x_nchw, (0, 2, 3, 1)).reshape(n, h * w, cin)
    sk = skip_nchw.reshape(n, cout, h, 2, w, 2)
    sk = jnp.transpose(sk, (0, 2, 4, 3, 5, 1)).reshape(n, h, w, cpk)  # parity-pack
    sk = jnp.pad(sk, ((0, 0), (1, 1), (1, 1), (0, 0)))                # 3x3 halo

    # ---- weight preprocessing (trace time / tiny runtime cost) --------------------
    # ConvTranspose2d weight (Cin, Cout, 2, 2) -> (Cin, 4*Cout), (a,b,oc) fastest.
    wup = jnp.transpose(params["up_w"], (0, 2, 3, 1)).reshape(cin, cpk)
    bup = jnp.tile(params["up_b"], 4).reshape(1, cpk)
    # Conv2d weight (Cout, 2*Cout, 3, 3) -> (3, 3, 2*Cout, Cout), split into the
    # up-path / skip-path halves and expand to the packed domain (tap-major).
    wc = jnp.transpose(params["conv_w"], (2, 3, 1, 0))
    eu = _expand_conv_weight(wc[:, :, :cout, :])
    es = _expand_conv_weight(wc[:, :, cout:, :])
    bc = jnp.tile(params["conv_b"], 4).reshape(1, cpk)

    # ---- single fused Pallas kernel, grid over batch (parallel) --------------------
    y_packed = pl.pallas_call(
        _decoder_fused_kernel,
        out_shape=jax.ShapeDtypeStruct((n, h * w, cpk), jnp.float32),
        grid=(n,),
        in_specs=[
            pl.BlockSpec((1, h * w, cin), lambda i: (i, 0, 0)),
            pl.BlockSpec((1, h + 2, w + 2, cpk), lambda i: (i, 0, 0, 0)),
            pl.BlockSpec((cin, cpk), lambda i: (0, 0)),
            pl.BlockSpec((1, cpk), lambda i: (0, 0)),
            pl.BlockSpec((9, cpk, cpk), lambda i: (0, 0, 0)),
            pl.BlockSpec((9, cpk, cpk), lambda i: (0, 0, 0)),
            pl.BlockSpec((1, cpk), lambda i: (0, 0)),
        ],
        out_specs=pl.BlockSpec((1, h * w, cpk), lambda i: (i, 0, 0)),
        scratch_shapes=[pltpu.VMEM((h + 2, w + 2, cpk), jnp.float32)],
        compiler_params=pltpu.CompilerParams(
            dimension_semantics=("parallel",)),
    )(x2, sk, wup, bup, eu, es, bc)

    # ---- output: parity-packed -> NCHW full resolution (single XLA transpose) ------
    y = y_packed.reshape(n, h, w, 2, 2, cout)
    y = jnp.transpose(y, (0, 5, 1, 3, 2, 4)).reshape(n, cout, 2 * h, 2 * w)
    return y


# ---------------------------------------------------------------------------
# Main
# ---------------------------------------------------------------------------

if __name__ == "__main__":
    in_ch, out_ch = 8, 4
    N, H, W = 2, 8, 8

    key = jax.random.PRNGKey(0)
    k = jax.random.split(key, 6)
    x = jax.random.normal(k[0], (N, in_ch, H, W), jnp.float32)
    skip = jax.random.normal(k[1], (N, out_ch, 2 * H, 2 * W), jnp.float32)
    params = {
        # nn.ConvTranspose2d(in_ch, out_ch, 2, stride=2): weight (Cin, Cout, 2, 2)
        "up_w": 0.1 * jax.random.normal(k[2], (in_ch, out_ch, 2, 2), jnp.float32),
        "up_b": 0.1 * jax.random.normal(k[3], (out_ch,), jnp.float32),
        # nn.Conv2d(2*out_ch, out_ch, 3, padding=1): weight (Cout, 2*Cout, 3, 3)
        "conv_w": 0.1 * jax.random.normal(k[4], (out_ch, 2 * out_ch, 3, 3), jnp.float32),
        "conv_b": 0.1 * jax.random.normal(k[5], (out_ch,), jnp.float32),
    }

    out = jax.jit(decoder_block_forward)(x, skip, params)
    out = jax.block_until_ready(out)

    # Independent reference via lax convolutions (PyTorch NCHW semantics).
    w_ct_as_conv = jnp.transpose(params["up_w"], (1, 0, 2, 3))[:, :, ::-1, ::-1]
    up_ref = lax.conv_general_dilated(
        x, w_ct_as_conv, window_strides=(1, 1), padding=((1, 1), (1, 1)),
        lhs_dilation=(2, 2), dimension_numbers=("NCHW", "OIHW", "NCHW"),
    ) + params["up_b"][None, :, None, None]
    cat_ref = jnp.concatenate([up_ref, skip], axis=1)
    conv_ref = lax.conv_general_dilated(
        cat_ref, params["conv_w"], window_strides=(1, 1),
        padding=((1, 1), (1, 1)), dimension_numbers=("NCHW", "OIHW", "NCHW"),
    ) + params["conv_b"][None, :, None, None]
    ref = jnp.maximum(conv_ref, 0.0)

    assert out.shape == ref.shape == (N, out_ch, 2 * H, 2 * W)
    max_err = float(jnp.max(jnp.abs(out - ref)))
    assert jnp.allclose(out, ref, atol=2e-4, rtol=2e-4), max_err
    print("KERNEL_OK")
</pallas_src>

<mosaic_0001>
module attributes {stable_mosaic.version = 11 : i64} {
  func.func @_decoder_fused_kernel(%arg0: i32, %arg1: memref<1x64x8xf32, #tpu.memory_space<vmem>>, %arg2: memref<1x10x10x16xf32, #tpu.memory_space<vmem>>, %arg3: memref<8x16xf32, #tpu.memory_space<vmem>>, %arg4: memref<1x16xf32, #tpu.memory_space<vmem>>, %arg5: memref<9x16x16xf32, #tpu.memory_space<vmem>>, %arg6: memref<9x16x16xf32, #tpu.memory_space<vmem>>, %arg7: memref<1x16xf32, #tpu.memory_space<vmem>>, %arg8: memref<1x64x16xf32, #tpu.memory_space<vmem>>, %arg9: memref<10x10x16xf32, #tpu.memory_space<vmem>>) attributes {dimension_semantics = [#tpu.dimension_semantics<parallel>], iteration_bounds = array<i64: 2>, scalar_prefetch = 0 : i64, scratch_operands = 1 : i64, tpu.core_type = #tpu.core_type<tc>, window_params = [{transform_indices = @transform_0, window_bounds = array<i64: 1, 64, 8>}, {transform_indices = @transform_1, window_bounds = array<i64: 1, 10, 10, 16>}, {pipeline_mode = #tpu.pipeline_mode<synchronous>, transform_indices = @transform_2, window_bounds = array<i64: 8, 16>}, {pipeline_mode = #tpu.pipeline_mode<synchronous>, transform_indices = @transform_3, window_bounds = array<i64: 1, 16>}, {pipeline_mode = #tpu.pipeline_mode<synchronous>, transform_indices = @transform_4, window_bounds = array<i64: 9, 16, 16>}, {pipeline_mode = #tpu.pipeline_mode<synchronous>, transform_indices = @transform_5, window_bounds = array<i64: 9, 16, 16>}, {pipeline_mode = #tpu.pipeline_mode<synchronous>, transform_indices = @transform_6, window_bounds = array<i64: 1, 16>}, {transform_indices = @transform_7, window_bounds = array<i64: 1, 64, 16>}]} {
    %c0 = arith.constant 0 : index
    %c0_0 = arith.constant 0 : index
    %c0_1 = arith.constant 0 : index
    %0 = vector.load %arg1[%c0, %c0_0, %c0_1] : memref<1x64x8xf32, #tpu.memory_space<vmem>>, vector<1x64x8xf32>
    %1 = vector.shape_cast %0 : vector<1x64x8xf32> to vector<64x8xf32>
    %c0_2 = arith.constant 0 : index
    %c0_3 = arith.constant 0 : index
    %2 = vector.load %arg3[%c0_2, %c0_3] : memref<8x16xf32, #tpu.memory_space<vmem>>, vector<8x16xf32>
    %cst = arith.constant dense<0.000000e+00> : vector<64x16xf32>
    %3 = tpu.matmul %1, %2, %cst {dimension_numbers = #tpu.dot_dimension_numbers<[1], [0], [0], [1], [0, 0, 1, 1], [], []>} : vector<64x8xf32>, vector<8x16xf32>, vector<64x16xf32> -> vector<64x16xf32>
    %c0_4 = arith.constant 0 : index
    %c0_5 = arith.constant 0 : index
    %4 = vector.load %arg4[%c0_4, %c0_5] : memref<1x16xf32, #tpu.memory_space<vmem>>, vector<1x16xf32>
    %5 = vector.broadcast %4 : vector<1x16xf32> to vector<64x16xf32>
    %6 = arith.addf %3, %5 : vector<64x16xf32>
    %cst_6 = arith.constant 0.000000e+00 : f32
    %7 = vector.broadcast %cst_6 : f32 to vector<10x10x16xf32>
    %c0_7 = arith.constant 0 : index
    %c0_8 = arith.constant 0 : index
    %c0_9 = arith.constant 0 : index
    %8 = vector.load %arg9[%c0_7, %c0_8, %c0_9] : memref<10x10x16xf32, #tpu.memory_space<vmem>>, vector<10x10x16xf32>
    tpu.vector_store %arg9[%c0_7, %c0_8, %c0_9], %7 {strides = array<i32>} : memref<10x10x16xf32, #tpu.memory_space<vmem>>, vector<10x10x16xf32>,
    %9 = vector.shape_cast %6 : vector<64x16xf32> to vector<8x8x16xf32>
    %c1 = arith.constant 1 : index
    %c1_10 = arith.constant 1 : index
    %c0_11 = arith.constant 0 : index
    %10 = vector.load %arg9[%c1, %c1_10, %c0_11] : memref<10x10x16xf32, #tpu.memory_space<vmem>>, vector<8x8x16xf32>
    tpu.vector_store %arg9[%c1, %c1_10, %c0_11], %9 {strides = array<i32>} : memref<10x10x16xf32, #tpu.memory_space<vmem>>, vector<8x8x16xf32>,
    %c0_12 = arith.constant 0 : index
    %c0_13 = arith.constant 0 : index
    %11 = vector.load %arg7[%c0_12, %c0_13] : memref<1x16xf32, #tpu.memory_space<vmem>>, vector<1x16xf32>
    %12 = vector.shape_cast %11 : vector<1x16xf32> to vector<1x16xf32>
    %13 = vector.broadcast %12 : vector<1x16xf32> to vector<64x16xf32>
    %c0_14 = arith.constant 0 : index
    %c0_15 = arith.constant 0 : index
    %c0_16 = arith.constant 0 : index
    %14 = vector.load %arg9[%c0_14, %c0_15, %c0_16] : memref<10x10x16xf32, #tpu.memory_space<vmem>>, vector<8x8x16xf32>
    %15 = vector.shape_cast %14 : vector<8x8x16xf32> to vector<64x16xf32>
    %c0_i32 = arith.constant 0 : i32
    %c0_i32_17 = arith.constant 0 : i32
    %c0_i32_18 = arith.constant 0 : i32
    %c0_i32_19 = arith.constant 0 : i32
    %16 = tpu.memref_slice %arg2[%c0_i32, %c0_i32_17, %c0_i32_18, %c0_i32_19] : memref<1x10x10x16xf32, #tpu.memory_space<vmem>> -> memref<1x10x10x16xf32, #tpu.memory_space<vmem>>
    %17 = tpu.memref_squeeze %16 : memref<1x10x10x16xf32, #tpu.memory_space<vmem>> -> memref<10x10x16xf32, #tpu.memory_space<vmem>>
    %c0_20 = arith.constant 0 : index
    %c0_21 = arith.constant 0 : index
    %c0_22 = arith.constant 0 : index
    %18 = vector.load %17[%c0_20, %c0_21, %c0_22] : memref<10x10x16xf32, #tpu.memory_space<vmem>>, vector<8x8x16xf32>
    %19 = vector.shape_cast %18 : vector<8x8x16xf32> to vector<64x16xf32>
    %c0_23 = arith.constant 0 : index
    %c0_24 = arith.constant 0 : index
    %c0_25 = arith.constant 0 : index
    %20 = vector.load %arg5[%c0_23, %c0_24, %c0_25] : memref<9x16x16xf32, #tpu.memory_space<vmem>>, vector<1x16x16xf32>
    %21 = vector.shape_cast %20 : vector<1x16x16xf32> to vector<16x16xf32>
    %cst_26 = arith.constant dense<0.000000e+00> : vector<64x16xf32>
    %22 = tpu.matmul %15, %21, %cst_26 {dimension_numbers = #tpu.dot_dimension_numbers<[1], [0], [0], [1], [0, 0, 1, 1], [], []>} : vector<64x16xf32>, vector<16x16xf32>, vector<64x16xf32> -> vector<64x16xf32>
    %23 = arith.addf %13, %22 : vector<64x16xf32>
    %c0_27 = arith.constant 0 : index
    %c0_28 = arith.constant 0 : index
    %c0_29 = arith.constant 0 : index
    %24 = vector.load %arg6[%c0_27, %c0_28, %c0_29] : memref<9x16x16xf32, #tpu.memory_space<vmem>>, vector<1x16x16xf32>
    %25 = vector.shape_cast %24 : vector<1x16x16xf32> to vector<16x16xf32>
    %cst_30 = arith.constant dense<0.000000e+00> : vector<64x16xf32>
    %26 = tpu.matmul %19, %25, %cst_30 {dimension_numbers = #tpu.dot_dimension_numbers<[1], [0], [0], [1], [0, 0, 1, 1], [], []>} : vector<64x16xf32>, vector<16x16xf32>, vector<64x16xf32> -> vector<64x16xf32>
    %27 = arith.addf %23, %26 : vector<64x16xf32>
    %c0_31 = arith.constant 0 : index
    %c1_32 = arith.constant 1 : index
    %c0_33 = arith.constant 0 : index
    %28 = vector.load %arg9[%c0_31, %c1_32, %c0_33] : memref<10x10x16xf32, #tpu.memory_space<vmem>>, vector<8x8x16xf32>
    %29 = vector.shape_cast %28 : vector<8x8x16xf32> to vector<64x16xf32>
    %c0_i32_34 = arith.constant 0 : i32
    %c0_i32_35 = arith.constant 0 : i32
    %c0_i32_36 = arith.constant 0 : i32
    %c0_i32_37 = arith.constant 0 : i32
    %30 = tpu.memref_slice %arg2[%c0_i32_34, %c0_i32_35, %c0_i32_36, %c0_i32_37] : memref<1x10x10x16xf32, #tpu.memory_space<vmem>> -> memref<1x10x10x16xf32, #tpu.memory_space<vmem>>
    %31 = tpu.memref_squeeze %30 : memref<1x10x10x16xf32, #tpu.memory_space<vmem>> -> memref<10x10x16xf32, #tpu.memory_space<vmem>>
    %c0_38 = arith.constant 0 : index
    %c1_39 = arith.constant 1 : index
    %c0_40 = arith.constant 0 : index
    %32 = vector.load %31[%c0_38, %c1_39, %c0_40] : memref<10x10x16xf32, #tpu.memory_space<vmem>>, vector<8x8x16xf32>
    %33 = vector.shape_cast %32 : vector<8x8x16xf32> to vector<64x16xf32>
    %c1_41 = arith.constant 1 : index
    %c0_42 = arith.constant 0 : index
    %c0_43 = arith.constant 0 : index
    %34 = vector.load %arg5[%c1_41, %c0_42, %c0_43] : memref<9x16x16xf32, #tpu.memory_space<vmem>>, vector<1x16x16xf32>
    %35 = vector.shape_cast %34 : vector<1x16x16xf32> to vector<16x16xf32>
    %cst_44 = arith.constant dense<0.000000e+00> : vector<64x16xf32>
    %36 = tpu.matmul %29, %35, %cst_44 {dimension_numbers = #tpu.dot_dimension_numbers<[1], [0], [0], [1], [0, 0, 1, 1], [], []>} : vector<64x16xf32>, vector<16x16xf32>, vector<64x16xf32> -> vector<64x16xf32>
    %37 = arith.addf %27, %36 : vector<64x16xf32>
    %c1_45 = arith.constant 1 : index
    %c0_46 = arith.constant 0 : index
    %c0_47 = arith.constant 0 : index
    %38 = vector.load %arg6[%c1_45, %c0_46, %c0_47] : memref<9x16x16xf32, #tpu.memory_space<vmem>>, vector<1x16x16xf32>
    %39 = vector.shape_cast %38 : vector<1x16x16xf32> to vector<16x16xf32>
    %cst_48 = arith.constant dense<0.000000e+00> : vector<64x16xf32>
    %40 = tpu.matmul %33, %39, %cst_48 {dimension_numbers = #tpu.dot_dimension_numbers<[1], [0], [0], [1], [0, 0, 1, 1], [], []>} : vector<64x16xf32>, vector<16x16xf32>, vector<64x16xf32> -> vector<64x16xf32>
    %41 = arith.addf %37, %40 : vector<64x16xf32>
    %c0_49 = arith.constant 0 : index
    %c2 = arith.constant 2 : index
    %c0_50 = arith.constant 0 : index
    %42 = vector.load %arg9[%c0_49, %c2, %c0_50] : memref<10x10x16xf32, #tpu.memory_space<vmem>>, vector<8x8x16xf32>
    %43 = vector.shape_cast %42 : vector<8x8x16xf32> to vector<64x16xf32>
    %c0_i32_51 = arith.constant 0 : i32
    %c0_i32_52 = arith.constant 0 : i32
    %c0_i32_53 = arith.constant 0 : i32
    %c0_i32_54 = arith.constant 0 : i32
    %44 = tpu.memref_slice %arg2[%c0_i32_51, %c0_i32_52, %c0_i32_53, %c0_i32_54] : memref<1x10x10x16xf32, #tpu.memory_space<vmem>> -> memref<1x10x10x16xf32, #tpu.memory_space<vmem>>
    %45 = tpu.memref_squeeze %44 : memref<1x10x10x16xf32, #tpu.memory_space<vmem>> -> memref<10x10x16xf32, #tpu.memory_space<vmem>>
    %c0_55 = arith.constant 0 : index
    %c2_56 = arith.constant 2 : index
    %c0_57 = arith.constant 0 : index
    %46 = vector.load %45[%c0_55, %c2_56, %c0_57] : memref<10x10x16xf32, #tpu.memory_space<vmem>>, vector<8x8x16xf32>
    %47 = vector.shape_cast %46 : vector<8x8x16xf32> to vector<64x16xf32>
    %c2_58 = arith.constant 2 : index
    %c0_59 = arith.constant 0 : index
    %c0_60 = arith.constant 0 : index
    %48 = vector.load %arg5[%c2_58, %c0_59, %c0_60] : memref<9x16x16xf32, #tpu.memory_space<vmem>>, vector<1x16x16xf32>
    %49 = vector.shape_cast %48 : vector<1x16x16xf32> to vector<16x16xf32>
    %cst_61 = arith.constant dense<0.000000e+00> : vector<64x16xf32>
    %50 = tpu.matmul %43, %49, %cst_61 {dimension_numbers = #tpu.dot_dimension_numbers<[1], [0], [0], [1], [0, 0, 1, 1], [], []>} : vector<64x16xf32>, vector<16x16xf32>, vector<64x16xf32> -> vector<64x16xf32>
    %51 = arith.addf %41, %50 : vector<64x16xf32>
    %c2_62 = arith.constant 2 : index
    %c0_63 = arith.constant 0 : index
    %c0_64 = arith.constant 0 : index
    %52 = vector.load %arg6[%c2_62, %c0_63, %c0_64] : memref<9x16x16xf32, #tpu.memory_space<vmem>>, vector<1x16x16xf32>
    %53 = vector.shape_cast %52 : vector<1x16x16xf32> to vector<16x16xf32>
    %cst_65 = arith.constant dense<0.000000e+00> : vector<64x16xf32>
    %54 = tpu.matmul %47, %53, %cst_65 {dimension_numbers = #tpu.dot_dimension_numbers<[1], [0], [0], [1], [0, 0, 1, 1], [], []>} : vector<64x16xf32>, vector<16x16xf32>, vector<64x16xf32> -> vector<64x16xf32>
    %55 = arith.addf %51, %54 : vector<64x16xf32>
    %c1_66 = arith.constant 1 : index
    %c0_67 = arith.constant 0 : index
    %c0_68 = arith.constant 0 : index
    %56 = vector.load %arg9[%c1_66, %c0_67, %c0_68] : memref<10x10x16xf32, #tpu.memory_space<vmem>>, vector<8x8x16xf32>
    %57 = vector.shape_cast %56 : vector<8x8x16xf32> to vector<64x16xf32>
    %c0_i32_69 = arith.constant 0 : i32
    %c0_i32_70 = arith.constant 0 : i32
    %c0_i32_71 = arith.constant 0 : i32
    %c0_i32_72 = arith.constant 0 : i32
    %58 = tpu.memref_slice %arg2[%c0_i32_69, %c0_i32_70, %c0_i32_71, %c0_i32_72] : memref<1x10x10x16xf32, #tpu.memory_space<vmem>> -> memref<1x10x10x16xf32, #tpu.memory_space<vmem>>
    %59 = tpu.memref_squeeze %58 : memref<1x10x10x16xf32, #tpu.memory_space<vmem>> -> memref<10x10x16xf32, #tpu.memory_space<vmem>>
    %c1_73 = arith.constant 1 : index
    %c0_74 = arith.constant 0 : index
    %c0_75 = arith.constant 0 : index
    %60 = vector.load %59[%c1_73, %c0_74, %c0_75] : memref<10x10x16xf32, #tpu.memory_space<vmem>>, vector<8x8x16xf32>
    %61 = vector.shape_cast %60 : vector<8x8x16xf32> to vector<64x16xf32>
    %c3 = arith.constant 3 : index
    %c0_76 = arith.constant 0 : index
    %c0_77 = arith.constant 0 : index
    %62 = vector.load %arg5[%c3, %c0_76, %c0_77] : memref<9x16x16xf32, #tpu.memory_space<vmem>>, vector<1x16x16xf32>
    %63 = vector.shape_cast %62 : vector<1x16x16xf32> to vector<16x16xf32>
    %cst_78 = arith.constant dense<0.000000e+00> : vector<64x16xf32>
    %64 = tpu.matmul %57, %63, %cst_78 {dimension_numbers = #tpu.dot_dimension_numbers<[1], [0], [0], [1], [0, 0, 1, 1], [], []>} : vector<64x16xf32>, vector<16x16xf32>, vector<64x16xf32> -> vector<64x16xf32>
    %65 = arith.addf %55, %64 : vector<64x16xf32>
    %c3_79 = arith.constant 3 : index
    %c0_80 = arith.constant 0 : index
    %c0_81 = arith.constant 0 : index
    %66 = vector.load %arg6[%c3_79, %c0_80, %c0_81] : memref<9x16x16xf32, #tpu.memory_space<vmem>>, vector<1x16x16xf32>
    %67 = vector.shape_cast %66 : vector<1x16x16xf32> to vector<16x16xf32>
    %cst_82 = arith.constant dense<0.000000e+00> : vector<64x16xf32>
    %68 = tpu.matmul %61, %67, %cst_82 {dimension_numbers = #tpu.dot_dimension_numbers<[1], [0], [0], [1], [0, 0, 1, 1], [], []>} : vector<64x16xf32>, vector<16x16xf32>, vector<64x16xf32> -> vector<64x16xf32>
    %69 = arith.addf %65, %68 : vector<64x16xf32>
    %c1_83 = arith.constant 1 : index
    %c1_84 = arith.constant 1 : index
    %c0_85 = arith.constant 0 : index
    %70 = vector.load %arg9[%c1_83, %c1_84, %c0_85] : memref<10x10x16xf32, #tpu.memory_space<vmem>>, vector<8x8x16xf32>
    %71 = vector.shape_cast %70 : vector<8x8x16xf32> to vector<64x16xf32>
    %c0_i32_86 = arith.constant 0 : i32
    %c0_i32_87 = arith.constant 0 : i32
    %c0_i32_88 = arith.constant 0 : i32
    %c0_i32_89 = arith.constant 0 : i32
    %72 = tpu.memref_slice %arg2[%c0_i32_86, %c0_i32_87, %c0_i32_88, %c0_i32_89] : memref<1x10x10x16xf32, #tpu.memory_space<vmem>> -> memref<1x10x10x16xf32, #tpu.memory_space<vmem>>
    %73 = tpu.memref_squeeze %72 : memref<1x10x10x16xf32, #tpu.memory_space<vmem>> -> memref<10x10x16xf32, #tpu.memory_space<vmem>>
    %c1_90 = arith.constant 1 : index
    %c1_91 = arith.constant 1 : index
    %c0_92 = arith.constant 0 : index
    %74 = vector.load %73[%c1_90, %c1_91, %c0_92] : memref<10x10x16xf32, #tpu.memory_space<vmem>>, vector<8x8x16xf32>
    %75 = vector.shape_cast %74 : vector<8x8x16xf32> to vector<64x16xf32>
    %c4 = arith.constant 4 : index
    %c0_93 = arith.constant 0 : index
    %c0_94 = arith.constant 0 : index
    %76 = vector.load %arg5[%c4, %c0_93, %c0_94] : memref<9x16x16xf32, #tpu.memory_space<vmem>>, vector<1x16x16xf32>
    %77 = vector.shape_cast %76 : vector<1x16x16xf32> to vector<16x16xf32>
    %cst_95 = arith.constant dense<0.000000e+00> : vector<64x16xf32>
    %78 = tpu.matmul %71, %77, %cst_95 {dimension_numbers = #tpu.dot_dimension_numbers<[1], [0], [0], [1], [0, 0, 1, 1], [], []>} : vector<64x16xf32>, vector<16x16xf32>, vector<64x16xf32> -> vector<64x16xf32>
    %79 = arith.addf %69, %78 : vector<64x16xf32>
    %c4_96 = arith.constant 4 : index
    %c0_97 = arith.constant 0 : index
    %c0_98 = arith.constant 0 : index
    %80 = vector.load %arg6[%c4_96, %c0_97, %c0_98] : memref<9x16x16xf32, #tpu.memory_space<vmem>>, vector<1x16x16xf32>
    %81 = vector.shape_cast %80 : vector<1x16x16xf32> to vector<16x16xf32>
    %cst_99 = arith.constant dense<0.000000e+00> : vector<64x16xf32>
    %82 = tpu.matmul %75, %81, %cst_99 {dimension_numbers = #tpu.dot_dimension_numbers<[1], [0], [0], [1], [0, 0, 1, 1], [], []>} : vector<64x16xf32>, vector<16x16xf32>, vector<64x16xf32> -> vector<64x16xf32>
    %83 = arith.addf %79, %82 : vector<64x16xf32>
    %c1_100 = arith.constant 1 : index
    %c2_101 = arith.constant 2 : index
    %c0_102 = arith.constant 0 : index
    %84 = vector.load %arg9[%c1_100, %c2_101, %c0_102] : memref<10x10x16xf32, #tpu.memory_space<vmem>>, vector<8x8x16xf32>
    %85 = vector.shape_cast %84 : vector<8x8x16xf32> to vector<64x16xf32>
    %c0_i32_103 = arith.constant 0 : i32
    %c0_i32_104 = arith.constant 0 : i32
    %c0_i32_105 = arith.constant 0 : i32
    %c0_i32_106 = arith.constant 0 : i32
    %86 = tpu.memref_slice %arg2[%c0_i32_103, %c0_i32_104, %c0_i32_105, %c0_i32_106] : memref<1x10x10x16xf32, #tpu.memory_space<vmem>> -> memref<1x10x10x16xf32, #tpu.memory_space<vmem>>
    %87 = tpu.memref_squeeze %86 : memref<1x10x10x16xf32, #tpu.memory_space<vmem>> -> memref<10x10x16xf32, #tpu.memory_space<vmem>>
    %c1_107 = arith.constant 1 : index
    %c2_108 = arith.constant 2 : index
    %c0_109 = arith.constant 0 : index
    %88 = vector.load %87[%c1_107, %c2_108, %c0_109] : memref<10x10x16xf32, #tpu.memory_space<vmem>>, vector<8x8x16xf32>
    %89 = vector.shape_cast %88 : vector<8x8x16xf32> to vector<64x16xf32>
    %c5 = arith.constant 5 : index
    %c0_110 = arith.constant 0 : index
    %c0_111 = arith.constant 0 : index
    %90 = vector.load %arg5[%c5, %c0_110, %c0_111] : memref<9x16x16xf32, #tpu.memory_space<vmem>>, vector<1x16x16xf32>
    %91 = vector.shape_cast %90 : vector<1x16x16xf32> to vector<16x16xf32>
    %cst_112 = arith.constant dense<0.000000e+00> : vector<64x16xf32>
    %92 = tpu.matmul %85, %91, %cst_112 {dimension_numbers = #tpu.dot_dimension_numbers<[1], [0], [0], [1], [0, 0, 1, 1], [], []>} : vector<64x16xf32>, vector<16x16xf32>, vector<64x16xf32> -> vector<64x16xf32>
    %93 = arith.addf %83, %92 : vector<64x16xf32>
    %c5_113 = arith.constant 5 : index
    %c0_114 = arith.constant 0 : index
    %c0_115 = arith.constant 0 : index
    %94 = vector.load %arg6[%c5_113, %c0_114, %c0_115] : memref<9x16x16xf32, #tpu.memory_space<vmem>>, vector<1x16x16xf32>
    %95 = vector.shape_cast %94 : vector<1x16x16xf32> to vector<16x16xf32>
    %cst_116 = arith.constant dense<0.000000e+00> : vector<64x16xf32>
    %96 = tpu.matmul %89, %95, %cst_116 {dimension_numbers = #tpu.dot_dimension_numbers<[1], [0], [0], [1], [0, 0, 1, 1], [], []>} : vector<64x16xf32>, vector<16x16xf32>, vector<64x16xf32> -> vector<64x16xf32>
    %97 = arith.addf %93, %96 : vector<64x16xf32>
    %c2_117 = arith.constant 2 : index
    %c0_118 = arith.constant 0 : index
    %c0_119 = arith.constant 0 : index
    %98 = vector.load %arg9[%c2_117, %c0_118, %c0_119] : memref<10x10x16xf32, #tpu.memory_space<vmem>>, vector<8x8x16xf32>
    %99 = vector.shape_cast %98 : vector<8x8x16xf32> to vector<64x16xf32>
    %c0_i32_120 = arith.constant 0 : i32
    %c0_i32_121 = arith.constant 0 : i32
    %c0_i32_122 = arith.constant 0 : i32
    %c0_i32_123 = arith.constant 0 : i32
    %100 = tpu.memref_slice %arg2[%c0_i32_120, %c0_i32_121, %c0_i32_122, %c0_i32_123] : memref<1x10x10x16xf32, #tpu.memory_space<vmem>> -> memref<1x10x10x16xf32, #tpu.memory_space<vmem>>
    %101 = tpu.memref_squeeze %100 : memref<1x10x10x16xf32, #tpu.memory_space<vmem>> -> memref<10x10x16xf32, #tpu.memory_space<vmem>>
    %c2_124 = arith.constant 2 : index
    %c0_125 = arith.constant 0 : index
    %c0_126 = arith.constant 0 : index
    %102 = vector.load %101[%c2_124, %c0_125, %c0_126] : memref<10x10x16xf32, #tpu.memory_space<vmem>>, vector<8x8x16xf32>
    %103 = vector.shape_cast %102 : vector<8x8x16xf32> to vector<64x16xf32>
    %c6 = arith.constant 6 : index
    %c0_127 = arith.constant 0 : index
    %c0_128 = arith.constant 0 : index
    %104 = vector.load %arg5[%c6, %c0_127, %c0_128] : memref<9x16x16xf32, #tpu.memory_space<vmem>>, vector<1x16x16xf32>
    %105 = vector.shape_cast %104 : vector<1x16x16xf32> to vector<16x16xf32>
    %cst_129 = arith.constant dense<0.000000e+00> : vector<64x16xf32>
    %106 = tpu.matmul %99, %105, %cst_129 {dimension_numbers = #tpu.dot_dimension_numbers<[1], [0], [0], [1], [0, 0, 1, 1], [], []>} : vector<64x16xf32>, vector<16x16xf32>, vector<64x16xf32> -> vector<64x16xf32>
    %107 = arith.addf %97, %106 : vector<64x16xf32>
    %c6_130 = arith.constant 6 : index
    %c0_131 = arith.constant 0 : index
    %c0_132 = arith.constant 0 : index
    %108 = vector.load %arg6[%c6_130, %c0_131, %c0_132] : memref<9x16x16xf32, #tpu.memory_space<vmem>>, vector<1x16x16xf32>
    %109 = vector.shape_cast %108 : vector<1x16x16xf32> to vector<16x16xf32>
    %cst_133 = arith.constant dense<0.000000e+00> : vector<64x16xf32>
    %110 = tpu.matmul %103, %109, %cst_133 {dimension_numbers = #tpu.dot_dimension_numbers<[1], [0], [0], [1], [0, 0, 1, 1], [], []>} : vector<64x16xf32>, vector<16x16xf32>, vector<64x16xf32> -> vector<64x16xf32>
    %111 = arith.addf %107, %110 : vector<64x16xf32>
    %c2_134 = arith.constant 2 : index
    %c1_135 = arith.constant 1 : index
    %c0_136 = arith.constant 0 : index
    %112 = vector.load %arg9[%c2_134, %c1_135, %c0_136] : memref<10x10x16xf32, #tpu.memory_space<vmem>>, vector<8x8x16xf32>
    %113 = vector.shape_cast %112 : vector<8x8x16xf32> to vector<64x16xf32>
    %c0_i32_137 = arith.constant 0 : i32
    %c0_i32_138 = arith.constant 0 : i32
    %c0_i32_139 = arith.constant 0 : i32
    %c0_i32_140 = arith.constant 0 : i32
    %114 = tpu.memref_slice %arg2[%c0_i32_137, %c0_i32_138, %c0_i32_139, %c0_i32_140] : memref<1x10x10x16xf32, #tpu.memory_space<vmem>> -> memref<1x10x10x16xf32, #tpu.memory_space<vmem>>
    %115 = tpu.memref_squeeze %114 : memref<1x10x10x16xf32, #tpu.memory_space<vmem>> -> memref<10x10x16xf32, #tpu.memory_space<vmem>>
    %c2_141 = arith.constant 2 : index
    %c1_142 = arith.constant 1 : index
    %c0_143 = arith.constant 0 : index
    %116 = vector.load %115[%c2_141, %c1_142, %c0_143] : memref<10x10x16xf32, #tpu.memory_space<vmem>>, vector<8x8x16xf32>
    %117 = vector.shape_cast %116 : vector<8x8x16xf32> to vector<64x16xf32>
    %c7 = arith.constant 7 : index
    %c0_144 = arith.constant 0 : index
    %c0_145 = arith.constant 0 : index
    %118 = vector.load %arg5[%c7, %c0_144, %c0_145] : memref<9x16x16xf32, #tpu.memory_space<vmem>>, vector<1x16x16xf32>
    %119 = vector.shape_cast %118 : vector<1x16x16xf32> to vector<16x16xf32>
    %cst_146 = arith.constant dense<0.000000e+00> : vector<64x16xf32>
    %120 = tpu.matmul %113, %119, %cst_146 {dimension_numbers = #tpu.dot_dimension_numbers<[1], [0], [0], [1], [0, 0, 1, 1], [], []>} : vector<64x16xf32>, vector<16x16xf32>, vector<64x16xf32> -> vector<64x16xf32>
    %121 = arith.addf %111, %120 : vector<64x16xf32>
    %c7_147 = arith.constant 7 : index
    %c0_148 = arith.constant 0 : index
    %c0_149 = arith.constant 0 : index
    %122 = vector.load %arg6[%c7_147, %c0_148, %c0_149] : memref<9x16x16xf32, #tpu.memory_space<vmem>>, vector<1x16x16xf32>
    %123 = vector.shape_cast %122 : vector<1x16x16xf32> to vector<16x16xf32>
    %cst_150 = arith.constant dense<0.000000e+00> : vector<64x16xf32>
    %124 = tpu.matmul %117, %123, %cst_150 {dimension_numbers = #tpu.dot_dimension_numbers<[1], [0], [0], [1], [0, 0, 1, 1], [], []>} : vector<64x16xf32>, vector<16x16xf32>, vector<64x16xf32> -> vector<64x16xf32>
    %125 = arith.addf %121, %124 : vector<64x16xf32>
    %c2_151 = arith.constant 2 : index
    %c2_152 = arith.constant 2 : index
    %c0_153 = arith.constant 0 : index
    %126 = vector.load %arg9[%c2_151, %c2_152, %c0_153] : memref<10x10x16xf32, #tpu.memory_space<vmem>>, vector<8x8x16xf32>
    %127 = vector.shape_cast %126 : vector<8x8x16xf32> to vector<64x16xf32>
    %c0_i32_154 = arith.constant 0 : i32
    %c0_i32_155 = arith.constant 0 : i32
    %c0_i32_156 = arith.constant 0 : i32
    %c0_i32_157 = arith.constant 0 : i32
    %128 = tpu.memref_slice %arg2[%c0_i32_154, %c0_i32_155, %c0_i32_156, %c0_i32_157] : memref<1x10x10x16xf32, #tpu.memory_space<vmem>> -> memref<1x10x10x16xf32, #tpu.memory_space<vmem>>
    %129 = tpu.memref_squeeze %128 : memref<1x10x10x16xf32, #tpu.memory_space<vmem>> -> memref<10x10x16xf32, #tpu.memory_space<vmem>>
    %c2_158 = arith.constant 2 : index
    %c2_159 = arith.constant 2 : index
    %c0_160 = arith.constant 0 : index
    %130 = vector.load %129[%c2_158, %c2_159, %c0_160] : memref<10x10x16xf32, #tpu.memory_space<vmem>>, vector<8x8x16xf32>
    %131 = vector.shape_cast %130 : vector<8x8x16xf32> to vector<64x16xf32>
    %c8 = arith.constant 8 : index
    %c0_161 = arith.constant 0 : index
    %c0_162 = arith.constant 0 : index
    %132 = vector.load %arg5[%c8, %c0_161, %c0_162] : memref<9x16x16xf32, #tpu.memory_space<vmem>>, vector<1x16x16xf32>
    %133 = vector.shape_cast %132 : vector<1x16x16xf32> to vector<16x16xf32>
    %cst_163 = arith.constant dense<0.000000e+00> : vector<64x16xf32>
    %134 = tpu.matmul %127, %133, %cst_163 {dimension_numbers = #tpu.dot_dimension_numbers<[1], [0], [0], [1], [0, 0, 1, 1], [], []>} : vector<64x16xf32>, vector<16x16xf32>, vector<64x16xf32> -> vector<64x16xf32>
    %135 = arith.addf %125, %134 : vector<64x16xf32>
    %c8_164 = arith.constant 8 : index
    %c0_165 = arith.constant 0 : index
    %c0_166 = arith.constant 0 : index
    %136 = vector.load %arg6[%c8_164, %c0_165, %c0_166] : memref<9x16x16xf32, #tpu.memory_space<vmem>>, vector<1x16x16xf32>
    %137 = vector.shape_cast %136 : vector<1x16x16xf32> to vector<16x16xf32>
    %cst_167 = arith.constant dense<0.000000e+00> : vector<64x16xf32>
    %138 = tpu.matmul %131, %137, %cst_167 {dimension_numbers = #tpu.dot_dimension_numbers<[1], [0], [0], [1], [0, 0, 1, 1], [], []>} : vector<64x16xf32>, vector<16x16xf32>, vector<64x16xf32> -> vector<64x16xf32>
    %139 = arith.addf %135, %138 : vector<64x16xf32>
    %cst_168 = arith.constant 0.000000e+00 : f32
    %140 = vector.broadcast %cst_168 : f32 to vector<64x16xf32>
    %141 = arith.maximumf %139, %140 : vector<64x16xf32>
    %c0_169 = arith.constant 0 : index
    %c0_170 = arith.constant 0 : index
    %c0_171 = arith.constant 0 : index
    %142 = vector.load %arg8[%c0_169, %c0_170, %c0_171] : memref<1x64x16xf32, #tpu.memory_space<vmem>>, vector<1x64x16xf32>
    %143 = vector.shape_cast %142 : vector<1x64x16xf32> to vector<64x16xf32>
    %144 = vector.shape_cast %141 : vector<64x16xf32> to vector<1x64x16xf32>
    tpu.vector_store %arg8[%c0_169, %c0_170, %c0_171], %144 {strides = array<i32>} : memref<1x64x16xf32, #tpu.memory_space<vmem>>, vector<1x64x16xf32>,
    return
  }
  func.func @transform_0(%arg0: i32) -> (i32, i32, i32) {
    %c0_i32 = arith.constant 0 : i32
    %c0_i32_0 = arith.constant 0 : i32
    %c0_i32_1 = arith.constant 0 : i32
    return %arg0, %c0_i32, %c0_i32_0 : i32, i32, i32
  }
  func.func @transform_1(%arg0: i32) -> (i32, i32, i32, i32) {
    %c0_i32 = arith.constant 0 : i32
    %c0_i32_0 = arith.constant 0 : i32
    %c0_i32_1 = arith.constant 0 : i32
    %c0_i32_2 = arith.constant 0 : i32
    return %arg0, %c0_i32, %c0_i32_0, %c0_i32_1 : i32, i32, i32, i32
  }
  func.func @transform_2(%arg0: i32) -> (i32, i32) {
    %c0_i32 = arith.constant 0 : i32
    %c0_i32_0 = arith.constant 0 : i32
    %c0_i32_1 = arith.constant 0 : i32
    return %c0_i32, %c0_i32_0 : i32, i32
  }
  func.func @transform_3(%arg0: i32) -> (i32, i32) {
    %c0_i32 = arith.constant 0 : i32
    %c0_i32_0 = arith.constant 0 : i32
    %c0_i32_1 = arith.constant 0 : i32
    return %c0_i32, %c0_i32_0 : i32, i32
  }
  func.func @transform_4(%arg0: i32) -> (i32, i32, i32) {
    %c0_i32 = arith.constant 0 : i32
    %c0_i32_0 = arith.constant 0 : i32
    %c0_i32_1 = arith.constant 0 : i32
    %c0_i32_2 = arith.constant 0 : i32
    return %c0_i32, %c0_i32_0, %c0_i32_1 : i32, i32, i32
  }
  func.func @transform_5(%arg0: i32) -> (i32, i32, i32) {
    %c0_i32 = arith.constant 0 : i32
    %c0_i32_0 = arith.constant 0 : i32
    %c0_i32_1 = arith.constant 0 : i32
    %c0_i32_2 = arith.constant 0 : i32
    return %c0_i32, %c0_i32_0, %c0_i32_1 : i32, i32, i32
  }
  func.func @transform_6(%arg0: i32) -> (i32, i32) {
    %c0_i32 = arith.constant 0 : i32
    %c0_i32_0 = arith.constant 0 : i32
    %c0_i32_1 = arith.constant 0 : i32
    return %c0_i32, %c0_i32_0 : i32, i32
  }
  func.func @transform_7(%arg0: i32) -> (i32, i32, i32) {
    %c0_i32 = arith.constant 0 : i32
    %c0_i32_0 = arith.constant 0 : i32
    %c0_i32_1 = arith.constant 0 : i32
    return %arg0, %c0_i32, %c0_i32_0 : i32, i32, i32
  }
}

</mosaic_0001>

<llo_original>
// kernel: tile.13
$region0: #{tile.13}
  #allocation0 [shape = 's32[1]{0}', space=sflag, size = 0x4, scoped, tag = 'scoped memory for tile.13']
  %s0 = inlined_call_operand.vmem [shape: f32[4], index: 0, kind: input, shape index: {}]
  %s1 = inlined_call_operand.vmem [shape: f32[4,4], index: 1, kind: output, shape index: {}]
  // Predicated region
  $region2: #{tile.13} parent=0 // pred_check
    _
  $region3: #{tile.13} parent=0 // pred_check_branch
    %3 = sbr.rel (0) target = $region5
  $region4: #{tile.13} parent=0 // pred_region
    _
  $region5: #{tile.13} parent=0 // pred_fallthru
    _
  %v4 = vld [vmem:[%s0] ss:$0 sm:$0xff]
  %5 = vst [vmem:[%s1] sm:$0xf] %v4

// kernel: tile.14
$region0: #{tile.14}
  %s0 = inlined_call_operand.vmem [shape: f32[4,4], index: 0, kind: input, shape index: {}]
  %s1 = inlined_call_operand.vmem [shape: f32[1,16], index: 1, kind: output, shape index: {}]
  $region1: #{tile.14} parent=0
    #allocation0 [shape = 'u8[4096]{0}', space=vmem, size = 0x1000, scoped, tag = 'scoped mem for output reshape']
    #allocation1 [shape = 'u8[4096]{0}', space=vmem, size = 0x1000, scoped, tag = 'scoped mem for input reshape']
    %s3 = ssub.s32 16, 1
    %v4 = vld [vmem:[%s0] sm:%s3]
    %5 = vst [vmem:[#allocation1] sm:%s3] %v4
    %v6 = vld [vmem:[#allocation1] sm:$0x1]
    %vm7 = vcmask 31744
    %8 = vst.msk [vmem:[#allocation0] sm:$0x1] %vm7, %v6
    %s9 = scalar_lea.vmem [#allocation1], 3
    %v10 = vld [vmem:[%s9] sm:$0x1]
    %11 = vrot.lane.b32.xlu0 %v10, 12
    %v12 = vpop.permute.xlu0 %11
    %vm13 = vcmask 130144
    %14 = vst.msk [vmem:[#allocation0] sm:$0x1] %vm13, %v12
    %s15 = scalar_lea.vmem [#allocation1], 2
    %v16 = vld [vmem:[%s15] sm:$0x1]
    %17 = vrot.lane.b32.xlu0 %v16, 8
    %v18 = vpop.permute.xlu0 %17
    %vm19 = vcmask 97344
    %20 = vst.msk [vmem:[#allocation0] sm:$0x1] %vm19, %v18
    %s21 = scalar_lea.vmem [#allocation1], 1
    %v22 = vld [vmem:[%s21] sm:$0x1]
    %23 = vrot.lane.b32.xlu0 %v22, 4
    %v24 = vpop.permute.xlu0 %23
    %vm25 = vcmask 64544
    %26 = vst.msk [vmem:[#allocation0] sm:$0x1] %vm25, %v24
    %s28 = ssub.s32 2, 1
    %v29 = vld [vmem:[#allocation0] sm:%s28]
    %s31 = ssub.s32 2, 1
    %32 = vst [vmem:[%s1] sm:%s31] %v29

// kernel: decoder_block_forward.1
$region0: #{decoder_block_forward.1}
  #allocation0 [shape = 'u32[]', space=smem, size = 0x4, offset = 0x4, fixed_abs, tag = 'smem constant byte address 0x4 - core index']
  #allocation1 [shape = 'u32[72,128]{1,0:T(1,128)}', space=vmem, size = 0x9000, scoped, tag = 'internal scratch']
  #allocation2 [shape = 'f32[10,10,16]{2,1,0:T(8,128)}', space=vmem, size = 0x14000, scoped, tag = 'scratch operand']
  %s0 = inlined_call_operand.vmem [shape: f32[2,64,8], index: 0, kind: input, shape index: {}]
  %s1 = inlined_call_operand.vmem [shape: f32[2,10,10,16], index: 1, kind: input, shape index: {}]
  %s2 = inlined_call_operand.vmem [shape: f32[8,16], index: 2, kind: input, shape index: {}]
  %s3 = inlined_call_operand.vmem [shape: f32[1,16], index: 3, kind: input, shape index: {}]
  %s4 = inlined_call_operand.vmem [shape: f32[9,16,16], index: 4, kind: input, shape index: {}]
  %s5 = inlined_call_operand.vmem [shape: f32[9,16,16], index: 5, kind: input, shape index: {}]
  %s6 = inlined_call_operand.vmem [shape: f32[1,16], index: 6, kind: input, shape index: {}]
  %s7 = inlined_call_operand.vmem [shape: f32[2,64,16], index: 7, kind: output, shape index: {}]
  %s8 = sld [smem:[#allocation0]]
  $region61: #{decoder_block_forward.1} parent=0
    _
  %s10 = ssub.s32 1, %s8
  %s11 = scalar_select 0, %s10, %s8
  loop: start=0, step=1, limit=4
  $region2: #{decoder_block_forward.1} parent=0 // loop_pre_header
    _
  $region3: #{decoder_block_forward.1} parent=0 // loop_header
    %s13 = sphi 0, %s17
    %p14 = scmp.ge.s32.totalorder %s13, 4
    %s23 = sphi 0, %s25
    %s26 = sphi 0, %s23
    %s27 = sphi 0, %s26
    %s43 = sphi 0, %s27
    %s49 = sphi 0, %s51
    %s52 = sphi 0, %s49
    %s53 = sphi 0, %s52
    %s69 = sphi 0, %s53
    %s73 = sphi 0, %s73
    %s75 = sphi 0, %s73
    %s76 = sphi 0, %s75
    %s90 = sphi 0, %s76
    %s94 = sphi 0, %s94
    %s96 = sphi 0, %s94
    %s97 = sphi 0, %s96
    %s111 = sphi 0, %s97
    %s115 = sphi 0, %s115
    %s117 = sphi 0, %s115
    %s118 = sphi 0, %s117
    %s132 = sphi 0, %s118
    %s136 = sphi 0, %s136
    %s138 = sphi 0, %s136
    %s139 = sphi 0, %s138
    %s153 = sphi 0, %s139
    %s157 = sphi 0, %s157
    %s159 = sphi 0, %s157
    %s160 = sphi 0, %s159
    %s174 = sphi 0, %s160
    %s180 = sphi 0, %s182
    %s183 = sphi 0, %s180
    %s184 = sphi 0, %s183
    %s200 = sphi 0, %s184
  $region4: #{decoder_block_forward.1} parent=0 // loop_header_branch
    %16 = sbr.rel (%p14) target = $region8
  $region5: #{decoder_block_forward.1} parent=0 // loop_body
    %s18 = ssub.s32 %s13, 1
    %s19 = ssub.s32 %s13, 2
    %s20 = sadd.s32 %s13, 1
    %s21 = ssub.s32 %s13, %s20
    %p22 = scmp.eq.s32.totalorder %s21, 0
    %s24 = sadd.s32 %s23, 1
    %s25 = scalar_select %p22, %s23, %s24
    %p28 = pneg %p22
    %p29 = scmp.eq.s32.totalorder %s13, 1
    %p30 = por %p28, %p29
    %p31 = scmp.ne.s32.totalorder %s23, %s26
    %p32 = scmp.eq.s32.totalorder %s13, 0
    %p33 = por %p31, %p32
    %p34 = scmp.ne.s32.totalorder %s23, %s26
    %p35 = scmp.eq.s32.totalorder %s18, 1
    %p36 = por %p34, %p35
    %p37 = scmp.ne.s32.totalorder %s26, %s27
    %p38 = scmp.eq.s32.totalorder %s18, 0
    %p39 = por %p37, %p38
    %p40 = scmp.ne.s32.totalorder %s26, %s27
    %p41 = scmp.eq.s32.totalorder %s19, 1
    %p42 = por %p40, %p41
    %p44 = scmp.ne.s32.totalorder %s27, %s43
    %p45 = scmp.eq.s32.totalorder %s19, 0
    %p46 = por %p44, %p45
    %s47 = ssub.s32 %s13, %s20
    %p48 = scmp.eq.s32.totalorder %s47, 0
    %s50 = sadd.s32 %s49, 1
    %s51 = scalar_select %p48, %s49, %s50
    %p54 = pneg %p48
    %p55 = scmp.eq.s32.totalorder %s13, 1
    %p56 = por %p54, %p55
    %p57 = scmp.ne.s32.totalorder %s49, %s52
    %p58 = scmp.eq.s32.totalorder %s13, 0
    %p59 = por %p57, %p58
    %p60 = scmp.ne.s32.totalorder %s49, %s52
    %p61 = scmp.eq.s32.totalorder %s18, 1
    %p62 = por %p60, %p61
    %p63 = scmp.ne.s32.totalorder %s52, %s53
    %p64 = scmp.eq.s32.totalorder %s18, 0
    %p65 = por %p63, %p64
    %p66 = scmp.ne.s32.totalorder %s52, %s53
    %p67 = scmp.eq.s32.totalorder %s19, 1
    %p68 = por %p66, %p67
    %p70 = scmp.ne.s32.totalorder %s53, %s69
    %p71 = scmp.eq.s32.totalorder %s19, 0
    %p72 = por %p70, %p71
    %s74 = sadd.s32 %s73, 1
    %p77 = scmp.eq.s32.totalorder %s13, 1
    %p78 = scmp.ne.s32.totalorder %s73, %s75
    %p79 = scmp.eq.s32.totalorder %s13, 0
    %p80 = por %p78, %p79
    %p81 = scmp.ne.s32.totalorder %s73, %s75
    %p82 = scmp.eq.s32.totalorder %s18, 1
    %p83 = por %p81, %p82
    %p84 = scmp.ne.s32.totalorder %s75, %s76
    %p85 = scmp.eq.s32.totalorder %s18, 0
    %p86 = por %p84, %p85
    %p87 = scmp.ne.s32.totalorder %s75, %s76
    %p88 = scmp.eq.s32.totalorder %s19, 1
    %p89 = por %p87, %p88
    %p91 = scmp.ne.s32.totalorder %s76, %s90
    %p92 = scmp.eq.s32.totalorder %s19, 0
    %p93 = por %p91, %p92
    %s95 = sadd.s32 %s94, 1
    %p98 = scmp.eq.s32.totalorder %s13, 1
    %p99 = scmp.ne.s32.totalorder %s94, %s96
    %p100 = scmp.eq.s32.totalorder %s13, 0
    %p101 = por %p99, %p100
    %p102 = scmp.ne.s32.totalorder %s94, %s96
    %p103 = scmp.eq.s32.totalorder %s18, 1
    %p104 = por %p102, %p103
    %p105 = scmp.ne.s32.totalorder %s96, %s97
    %p106 = scmp.eq.s32.totalorder %s18, 0
    %p107 = por %p105, %p106
    %p108 = scmp.ne.s32.totalorder %s96, %s97
    %p109 = scmp.eq.s32.totalorder %s19, 1
    %p110 = por %p108, %p109
    %p112 = scmp.ne.s32.totalorder %s97, %s111
    %p113 = scmp.eq.s32.totalorder %s19, 0
    %p114 = por %p112, %p113
    %s116 = sadd.s32 %s115, 1
    %p119 = scmp.eq.s32.totalorder %s13, 1
    %p120 = scmp.ne.s32.totalorder %s115, %s117
    %p121 = scmp.eq.s32.totalorder %s13, 0
    %p122 = por %p120, %p121
    %p123 = scmp.ne.s32.totalorder %s115, %s117
    %p124 = scmp.eq.s32.totalorder %s18, 1
    %p125 = por %p123, %p124
    %p126 = scmp.ne.s32.totalorder %s117, %s118
    %p127 = scmp.eq.s32.totalorder %s18, 0
    %p128 = por %p126, %p127
    %p129 = scmp.ne.s32.totalorder %s117, %s118
    %p130 = scmp.eq.s32.totalorder %s19, 1
    %p131 = por %p129, %p130
    %p133 = scmp.ne.s32.totalorder %s118, %s132
    %p134 = scmp.eq.s32.totalorder %s19, 0
    %p135 = por %p133, %p134
    %s137 = sadd.s32 %s136, 1
    %p140 = scmp.eq.s32.totalorder %s13, 1
    %p141 = scmp.ne.s32.totalorder %s136, %s138
    %p142 = scmp.eq.s32.totalorder %s13, 0
    %p143 = por %p141, %p142
    %p144 = scmp.ne.s32.totalorder %s136, %s138
    %p145 = scmp.eq.s32.totalorder %s18, 1
    %p146 = por %p144, %p145
    %p147 = scmp.ne.s32.totalorder %s138, %s139
    %p148 = scmp.eq.s32.totalorder %s18, 0
    %p149 = por %p147, %p148
    %p150 = scmp.ne.s32.totalorder %s138, %s139
    %p151 = scmp.eq.s32.totalorder %s19, 1
    %p152 = por %p150, %p151
    %p154 = scmp.ne.s32.totalorder %s139, %s153
    %p155 = scmp.eq.s32.totalorder %s19, 0
    %p156 = por %p154, %p155
    %s158 = sadd.s32 %s157, 1
    %p161 = scmp.eq.s32.totalorder %s13, 1
    %p162 = scmp.ne.s32.totalorder %s157, %s159
    %p163 = scmp.eq.s32.totalorder %s13, 0
    %p164 = por %p162, %p163
    %p165 = scmp.ne.s32.totalorder %s157, %s159
    %p166 = scmp.eq.s32.totalorder %s18, 1
    %p167 = por %p165, %p166
    %p168 = scmp.ne.s32.totalorder %s159, %s160
    %p169 = scmp.eq.s32.totalorder %s18, 0
    %p170 = por %p168, %p169
    %p171 = scmp.ne.s32.totalorder %s159, %s160
    %p172 = scmp.eq.s32.totalorder %s19, 1
    %p173 = por %p171, %p172
    %p175 = scmp.ne.s32.totalorder %s160, %s174
    %p176 = scmp.eq.s32.totalorder %s19, 0
    %p177 = por %p175, %p176
    %s178 = ssub.s32 %s13, %s20
    %p179 = scmp.eq.s32.totalorder %s178, 0
    %s181 = sadd.s32 %s180, 1
    %s182 = scalar_select %p179, %s180, %s181
    %p185 = pneg %p179
    %p186 = scmp.eq.s32.totalorder %s13, 1
    %p187 = por %p185, %p186
    %p188 = scmp.ne.s32.totalorder %s180, %s183
    %p189 = scmp.eq.s32.totalorder %s13, 0
    %p190 = por %p188, %p189
    %p191 = scmp.ne.s32.totalorder %s180, %s183
    %p192 = scmp.eq.s32.totalorder %s18, 1
    %p193 = por %p191, %p192
    %p194 = scmp.ne.s32.totalorder %s183, %s184
    %p195 = scmp.eq.s32.totalorder %s18, 0
    %p196 = por %p194, %p195
    %p197 = scmp.ne.s32.totalorder %s183, %s184
    %p198 = scmp.eq.s32.totalorder %s19, 1
    %p199 = por %p197, %p198
    %p201 = scmp.ne.s32.totalorder %s184, %s200
    %p202 = scmp.eq.s32.totalorder %s19, 0
    %p203 = por %p201, %p202
    %p204 = scmp.le.s32.totalorder 1, %s13
    %p205 = scmp.lt.s32.totalorder %s13, 3
    %p206 = pnand %p204, %p205
    %p207 = pneg %p206
    // Predicated region
    $region9: #{decoder_block_forward.1} parent=5 // pred_check
      _
    $region10: #{decoder_block_forward.1} parent=5 // pred_check_branch
      %209 = sbr.rel (%p206) target = $region12
    $region11: #{decoder_block_forward.1} parent=5 // pred_region
      %s210 = ssub.s32 %s13, 1
      // Predicated region
      $region13: #{decoder_block_forward.1} parent=11 // pred_check
        %p211 = pneg %p86
      $region14: #{decoder_block_forward.1} parent=11 // pred_check_branch
        %213 = sbr.rel (%p211) target = $region16
      $region15: #{decoder_block_forward.1} parent=11 // pred_region
        _
      $region16: #{decoder_block_forward.1} parent=11 // pred_fallthru
        _
      // Predicated region
      $region17: #{decoder_block_forward.1} parent=11 // pred_check
        %p214 = pneg %p107
      $region18: #{decoder_block_forward.1} parent=11 // pred_check_branch
        %216 = sbr.rel (%p214) target = $region20
      $region19: #{decoder_block_forward.1} parent=11 // pred_region
        _
      $region20: #{decoder_block_forward.1} parent=11 // pred_fallthru
        _
      // Predicated region
      $region21: #{decoder_block_forward.1} parent=11 // pred_check
        %p217 = pneg %p128
      $region22: #{decoder_block_forward.1} parent=11 // pred_check_branch
        %219 = sbr.rel (%p217) target = $region24
      $region23: #{decoder_block_forward.1} parent=11 // pred_region
        _
      $region24: #{decoder_block_forward.1} parent=11 // pred_fallthru
        _
      // Predicated region
      $region25: #{decoder_block_forward.1} parent=11 // pred_check
        %p220 = pneg %p149
      $region26: #{decoder_block_forward.1} parent=11 // pred_check_branch
        %222 = sbr.rel (%p220) target = $region28
      $region27: #{decoder_block_forward.1} parent=11 // pred_region
        _
      $region28: #{decoder_block_forward.1} parent=11 // pred_fallthru
        _
      // Predicated region
      $region29: #{decoder_block_forward.1} parent=11 // pred_check
        %p223 = pneg %p170
      $region30: #{decoder_block_forward.1} parent=11 // pred_check_branch
        %225 = sbr.rel (%p223) target = $region32
      $region31: #{decoder_block_forward.1} parent=11 // pred_region
        _
      $region32: #{decoder_block_forward.1} parent=11 // pred_fallthru
        _
    $region12: #{decoder_block_forward.1} parent=5 // pred_fallthru
      _
    %p226 = scmp.lt.s32.totalorder %s13, 2
    // Predicated region
    $region33: #{decoder_block_forward.1} parent=5 // pred_check
      %p227 = pneg %p226
    $region34: #{decoder_block_forward.1} parent=5 // pred_check_branch
      %229 = sbr.rel (%p227) target = $region36
    $region35: #{decoder_block_forward.1} parent=5 // pred_region
      // Predicated region
      $region37: #{decoder_block_forward.1} parent=35 // pred_check
        %p230 = pneg %p33
      $region38: #{decoder_block_forward.1} parent=35 // pred_check_branch
        %232 = sbr.rel (%p230) target = $region40
      $region39: #{decoder_block_forward.1} parent=35 // pred_region
        %p233 = scmp.lt.s32.totalorder %s13, 1
        %s234 = scalar_select %p233, %s13, 1
        %s235 = smul.addr %s234, 8
        %s236 = smul.addr %s235, 8
        %s237 = scalar_lea.vmem %s0, %s236
      $region40: #{decoder_block_forward.1} parent=35 // pred_fallthru
        _
      // Predicated region
      $region41: #{decoder_block_forward.1} parent=35 // pred_check
        %p238 = pneg %p59
      $region42: #{decoder_block_forward.1} parent=35 // pred_check_branch
        %240 = sbr.rel (%p238) target = $region44
      $region43: #{decoder_block_forward.1} parent=35 // pred_region
        %p241 = scmp.lt.s32.totalorder %s13, 1
        %s242 = scalar_select %p241, %s13, 1
        %s243 = smul.addr %s242, 20
        %s244 = smul.addr %s243, 8
        %s245 = scalar_lea.vmem %s1, %s244
      $region44: #{decoder_block_forward.1} parent=35 // pred_fallthru
        _
    $region36: #{decoder_block_forward.1} parent=5 // pred_fallthru
      _
    %p246 = scmp.le.s32.totalorder 1, %s13
    %p247 = scmp.lt.s32.totalorder %s13, 3
    %p248 = pnand %p246, %p247
    %p249 = pneg %p248
    // Predicated region
    $region45: #{decoder_block_forward.1} parent=5 // pred_check
      _
    $region46: #{decoder_block_forward.1} parent=5 // pred_check_branch
      %251 = sbr.rel (%p248) target = $region48
    $region47: #{decoder_block_forward.1} parent=5 // pred_region
      %s252 = ssub.s32 %s13, 1
      %p253 = scmp.lt.s32.totalorder %s18, 1
      %s254 = scalar_select %p253, %s18, 1
      %s255 = smul.addr %s254, 8
      %s256 = smul.addr %s255, 8
      %s257 = scalar_lea.vmem %s0, %s256
      %p258 = pneg %p39
      %p259 = pneg %p36
      %p260 = scmp.lt.s32.totalorder %s18, 1
      %s261 = scalar_select %p260, %s18, 1
      %s262 = smul.addr %s261, 20
      %s263 = smul.addr %s262, 8
      %s264 = scalar_lea.vmem %s1, %s263
      %p265 = pneg %p65
      %p266 = pneg %p62
      %p267 = pneg %p86
      %p268 = pneg %p83
      %p269 = pneg %p107
      %p270 = pneg %p104
      %p271 = pneg %p128
      %p272 = pneg %p125
      %p273 = pneg %p149
      %p274 = pneg %p146
      %p275 = pneg %p170
      %p276 = pneg %p167
      %p277 = pneg %p196
      %p278 = pneg %p193
      %p279 = scmp.lt.s32.totalorder %s18, 1
      %s280 = scalar_select %p279, %s18, 1
      %s281 = smul.addr %s280, 8
      %s282 = smul.addr %s281, 8
      %s283 = scalar_lea.vmem %s7, %s282
      %p284 = scmp.lt.s32.totalorder %s18, 1
      %s285 = scalar_select %p284, %s18, 1
      %s286 = smul.addr %s285, 8
      %s287 = smul.addr %s286, 8
      %s288 = scalar_lea.vmem %s0, %s287
      %p289 = scmp.lt.s32.totalorder %s18, 1
      %s290 = scalar_select %p289, %s18, 1
      %s291 = smul.addr %s290, 20
      %s292 = smul.addr %s291, 8
      %s293 = scalar_lea.vmem %s1, %s292
      %p294 = scmp.lt.s32.totalorder %s18, 1
      %s295 = scalar_select %p294, %s18, 1
      %s296 = smul.addr %s295, 8
      %s297 = smul.addr %s296, 8
      %s298 = scalar_lea.vmem %s7, %s297
      %v299 = vld [vmem:[%s288] sm:$0xff]
      %v300 = vld [vmem:[%s288 + $0x8] sm:$0xff]
      %v301 = vld [vmem:[%s288 + $0x10] sm:$0xff]
      %v302 = vld [vmem:[%s288 + $0x18] sm:$0xff]
      %v303 = vld [vmem:[%s288 + $0x20] sm:$0xff]
      %v304 = vld [vmem:[%s288 + $0x28] sm:$0xff]
      %v305 = vld [vmem:[%s288 + $0x30] sm:$0xff]
      %v306 = vld [vmem:[%s288 + $0x38] sm:$0xff]
      %v307 = vld [vmem:[%s2] sm:$0xff]
      %v308 = vld [vmem:[%s3] sm:$0x1]
      %v310 = vperm.slane %v308, 0
      %vm312 = vcmask 64512
      %v314 = vsel %vm312, %v299, 0
      %v317 = vsel %vm312, %v300, 0
      %v320 = vsel %vm312, %v301, 0
      %v323 = vsel %vm312, %v302, 0
      %v326 = vsel %vm312, %v303, 0
      %v329 = vsel %vm312, %v304, 0
      %v332 = vsel %vm312, %v305, 0
      %v335 = vsel %vm312, %v306, 0
      %337 = vmatpush.msra.mxu0 0.0
      %338 = vmatpush.msra.mxu0 0.0
      %339 = vmatpush.msra.mxu0 0.0
      %340 = vmatpush.msra.mxu0 0.0
      %341 = vmatpush.msra.mxu0 0.0
      %342 = vmatpush.msra.mxu0 0.0
      %343 = vmatpush.msra.mxu0 0.0
      %344 = vmatpush.msra.mxu0 0.0
      %345 = vmatpush.msra.mxu0 0.0
      %346 = vmatpush.msra.mxu0 0.0
      %347 = vmatpush.msra.mxu0 0.0
      %348 = vmatpush.msra.mxu0 0.0
      %349 = vmatpush.msra.mxu0 0.0
      %350 = vmatpush.msra.mxu0 0.0
      %351 = vmatpush.msra.mxu0 0.0
      %352 = vmatpush.msra.mxu0 %v307
      %353 = vmatmul.f32.gmra.mxu0 %v314
      %v354 = vpop.f32.mrf.mxu0
      %v355 = vadd.f32 %v310, %v354
      %356 = vmatmul.f32.gmra.mxu0 %v317
      %v357 = vpop.f32.mrf.mxu0
      %v358 = vadd.f32 %v310, %v357
      %359 = vmatmul.f32.gmra.mxu0 %v320
      %v360 = vpop.f32.mrf.mxu0
      %v361 = vadd.f32 %v310, %v360
      %362 = vmatmul.f32.gmra.mxu0 %v323
      %v363 = vpop.f32.mrf.mxu0
      %v364 = vadd.f32 %v310, %v363
      %365 = vmatmul.f32.gmra.mxu0 %v326
      %v366 = vpop.f32.mrf.mxu0
      %v367 = vadd.f32 %v310, %v366
      %368 = vmatmul.f32.gmra.mxu0 %v329
      %v369 = vpop.f32.mrf.mxu0
      %v370 = vadd.f32 %v310, %v369
      %371 = vmatmul.f32.gmra.mxu0 %v332
      %v372 = vpop.f32.mrf.mxu0
      %v373 = vadd.f32 %v310, %v372
      %374 = vmatmul.f32.gmra.mxu0 %v335
      %v375 = vpop.f32.mrf.mxu0
      %v376 = vadd.f32 %v310, %v375
      %377 = vdwg.mxu0
      %vm378 = vcmask 130048
      %379 = vst.msk [vmem:[#allocation2] sm:$0xff] %vm378, 0.0
      %vm380 = vcmask 123904
      %381 = vst.msk [vmem:[#allocation2 + $0x8] sm:$0x3] %vm380, 0.0
      %382 = vst.msk [vmem:[#allocation2 + $0x10] sm:$0xff] %vm378, 0.0
      %383 = vst.msk [vmem:[#allocation2 + $0x18] sm:$0x3] %vm380, 0.0
      %384 = vst.msk [vmem:[#allocation2 + $0x20] sm:$0xff] %vm378, 0.0
      %385 = vst.msk [vmem:[#allocation2 + $0x28] sm:$0x3] %vm380, 0.0
      %386 = vst.msk [vmem:[#allocation2 + $0x30] sm:$0xff] %vm378, 0.0
      %387 = vst.msk [vmem:[#allocation2 + $0x38] sm:$0x3] %vm380, 0.0
      %388 = vst.msk [vmem:[#allocation2 + $0x40] sm:$0xff] %vm378, 0.0
      %389 = vst.msk [vmem:[#allocation2 + $0x48] sm:$0x3] %vm380, 0.0
      %390 = vst.msk [vmem:[#allocation2 + $0x50] sm:$0xff] %vm378, 0.0
      %391 = vst.msk [vmem:[#allocation2 + $0x58] sm:$0x3] %vm380, 0.0
      %392 = vst.msk [vmem:[#allocation2 + $0x60] sm:$0xff] %vm378, 0.0
      %393 = vst.msk [vmem:[#allocation2 + $0x68] sm:$0x3] %vm380, 0.0
      %394 = vst.msk [vmem:[#allocation2 + $0x70] sm:$0xff] %vm378, 0.0
      %395 = vst.msk [vmem:[#allocation2 + $0x78] sm:$0x3] %vm380, 0.0
      %396 = vst.msk [vmem:[#allocation2 + $0x80] sm:$0xff] %vm378, 0.0
      %397 = vst.msk [vmem:[#allocation2 + $0x88] sm:$0x3] %vm380, 0.0
      %398 = vst.msk [vmem:[#allocation2 + $0x90] sm:$0xff] %vm378, 0.0
      %399 = vst.msk [vmem:[#allocation2 + $0x98] sm:$0x3] %vm380, 0.0
      %s400 = scalar_lea.vmem [#allocation2], 16
      %401 = vst.msk [vmem:[%s400 + $0x1] sm:$0xff] %vm378, %v355
      %402 = vst.msk [vmem:[%s400 + $0x11] sm:$0xff] %vm378, %v358
      %403 = vst.msk [vmem:[%s400 + $0x21] sm:$0xff] %vm378, %v361
      %404 = vst.msk [vmem:[%s400 + $0x31] sm:$0xff] %vm378, %v364
      %405 = vst.msk [vmem:[%s400 + $0x41] sm:$0xff] %vm378, %v367
      %406 = vst.msk [vmem:[%s400 + $0x51] sm:$0xff] %vm378, %v370
      %407 = vst.msk [vmem:[%s400 + $0x61] sm:$0xff] %vm378, %v373
      %408 = vst.msk [vmem:[%s400 + $0x71] sm:$0xff] %vm378, %v376
      %v409 = vld [vmem:[%s6] sm:$0x1]
      %v411 = vperm.slane %v409, 0
      %v413 = vld [vmem:[#allocation2] sm:$0xff]
      %v414 = vld [vmem:[#allocation2 + $0x10] sm:$0xff]
      %v415 = vld [vmem:[#allocation2 + $0x20] sm:$0xff]
      %v416 = vld [vmem:[#allocation2 + $0x30] sm:$0xff]
      %v417 = vld [vmem:[#allocation2 + $0x40] sm:$0xff]
      %v418 = vld [vmem:[#allocation2 + $0x50] sm:$0xff]
      %v419 = vld [vmem:[#allocation2 + $0x60] sm:$0xff]
      %v420 = vld [vmem:[#allocation2 + $0x70] sm:$0xff]
      %v421 = vld [vmem:[%s293] sm:$0xff]
      %v422 = vld [vmem:[%s293 + $0x10] sm:$0xff]
      %v423 = vld [vmem:[%s293 + $0x20] sm:$0xff]
      %v424 = vld [vmem:[%s293 + $0x30] sm:$0xff]
      %v425 = vld [vmem:[%s293 + $0x40] sm:$0xff]
      %v426 = vld [vmem:[%s293 + $0x50] sm:$0xff]
      %v427 = vld [vmem:[%s293 + $0x60] sm:$0xff]
      %v428 = vld [vmem:[%s293 + $0x70] sm:$0xff]
      %v429 = vld [vmem:[%s4] sm:$0xff]
      %v430 = vld [vmem:[%s4 + $0x8] sm:$0xff]
      %v432 = vsel %vm378, %v413, 0
      %v435 = vsel %vm378, %v414, 0
      %v438 = vsel %vm378, %v415, 0
      %v441 = vsel %vm378, %v416, 0
      %v444 = vsel %vm378, %v417, 0
      %v447 = vsel %vm378, %v418, 0
      %v450 = vsel %vm378, %v419, 0
      %v453 = vsel %vm378, %v420, 0
      %455 = vmatpush.msra.mxu0 0.0
      %456 = vmatpush.msra.mxu0 0.0
      %457 = vmatpush.msra.mxu0 0.0
      %458 = vmatpush.msra.mxu0 0.0
      %459 = vmatpush.msra.mxu0 0.0
      %460 = vmatpush.msra.mxu0 0.0
      %461 = vmatpush.msra.mxu0 0.0
      %462 = vmatpush.msra.mxu0 0.0
      %463 = vmatpush.msra.mxu0 0.0
      %464 = vmatpush.msra.mxu0 0.0
      %465 = vmatpush.msra.mxu0 0.0
      %466 = vmatpush.msra.mxu0 0.0
      %467 = vmatpush.msra.mxu0 0.0
      %468 = vmatpush.msra.mxu0 0.0
      %469 = vmatpush.msra.mxu0 %v430
      %470 = vmatpush.msra.mxu0 %v429
      %471 = vmatmul.f32.gmra.mxu0 %v432
      %v472 = vpop.f32.mrf.mxu0
      %v473 = vadd.f32 0.0, %v472
      %474 = vmatmul.f32.gmra.mxu0 %v435
      %v475 = vpop.f32.mrf.mxu0
      %v476 = vadd.f32 0.0, %v475
      %477 = vmatmul.f32.gmra.mxu0 %v438
      %v478 = vpop.f32.mrf.mxu0
      %v479 = vadd.f32 0.0, %v478
      %480 = vmatmul.f32.gmra.mxu0 %v441
      %v481 = vpop.f32.mrf.mxu0
      %v482 = vadd.f32 0.0, %v481
      %483 = vmatmul.f32.gmra.mxu0 %v444
      %v484 = vpop.f32.mrf.mxu0
      %v485 = vadd.f32 0.0, %v484
      %486 = vmatmul.f32.gmra.mxu0 %v447
      %v487 = vpop.f32.mrf.mxu0
      %v488 = vadd.f32 0.0, %v487
      %489 = vmatmul.f32.gmra.mxu0 %v450
      %v490 = vpop.f32.mrf.mxu0
      %v491 = vadd.f32 0.0, %v490
      %492 = vmatmul.f32.gmra.mxu0 %v453
      %v493 = vpop.f32.mrf.mxu0
      %v494 = vadd.f32 0.0, %v493
      %495 = vdwg.mxu0
      %v496 = vadd.f32 %v411, %v473
      %v497 = vadd.f32 %v411, %v476
      %v498 = vadd.f32 %v411, %v479
      %v499 = vadd.f32 %v411, %v482
      %v500 = vadd.f32 %v411, %v485
      %v501 = vadd.f32 %v411, %v488
      %v502 = vadd.f32 %v411, %v491
      %v503 = vadd.f32 %v411, %v494
      %v504 = vld [vmem:[%s5] sm:$0xff]
      %v505 = vld [vmem:[%s5 + $0x8] sm:$0xff]
      %v507 = vsel %vm378, %v421, 0
      %v510 = vsel %vm378, %v422, 0
      %v513 = vsel %vm378, %v423, 0
      %v516 = vsel %vm378, %v424, 0
      %v519 = vsel %vm378, %v425, 0
      %v522 = vsel %vm378, %v426, 0
      %v525 = vsel %vm378, %v427, 0
      %v528 = vsel %vm378, %v428, 0
      %530 = vmatpush.msra.mxu0 0.0
      %531 = vmatpush.msra.mxu0 0.0
      %532 = vmatpush.msra.mxu0 0.0
      %533 = vmatpush.msra.mxu0 0.0
      %534 = vmatpush.msra.mxu0 0.0
      %535 = vmatpush.msra.mxu0 0.0
      %536 = vmatpush.msra.mxu0 0.0
      %537 = vmatpush.msra.mxu0 0.0
      %538 = vmatpush.msra.mxu0 0.0
      %539 = vmatpush.msra.mxu0 0.0
      %540 = vmatpush.msra.mxu0 0.0
      %541 = vmatpush.msra.mxu0 0.0
      %542 = vmatpush.msra.mxu0 0.0
      %543 = vmatpush.msra.mxu0 0.0
      %544 = vmatpush.msra.mxu0 %v505
      %545 = vmatpush.msra.mxu0 %v504
      %546 = vmatmul.f32.gmra.mxu0 %v507
      %v547 = vpop.f32.mrf.mxu0
      %v548 = vadd.f32 0.0, %v547
      %549 = vmatmul.f32.gmra.mxu0 %v510
      %v550 = vpop.f32.mrf.mxu0
      %v551 = vadd.f32 0.0, %v550
      %552 = vmatmul.f32.gmra.mxu0 %v513
      %v553 = vpop.f32.mrf.mxu0
      %v554 = vadd.f32 0.0, %v553
      %555 = vmatmul.f32.gmra.mxu0 %v516
      %v556 = vpop.f32.mrf.mxu0
      %v557 = vadd.f32 0.0, %v556
      %558 = vmatmul.f32.gmra.mxu0 %v519
      %v559 = vpop.f32.mrf.mxu0
      %v560 = vadd.f32 0.0, %v559
      %561 = vmatmul.f32.gmra.mxu0 %v522
      %v562 = vpop.f32.mrf.mxu0
      %v563 = vadd.f32 0.0, %v562
      %564 = vmatmul.f32.gmra.mxu0 %v525
      %v565 = vpop.f32.mrf.mxu0
      %v566 = vadd.f32 0.0, %v565
      %567 = vmatmul.f32.gmra.mxu0 %v528
      %v568 = vpop.f32.mrf.mxu0
      %v569 = vadd.f32 0.0, %v568
      %570 = vdwg.mxu0
      %v571 = vadd.f32 %v496, %v548
      %v572 = vadd.f32 %v497, %v551
      %v573 = vadd.f32 %v498, %v554
      %v574 = vadd.f32 %v499, %v557
      %v575 = vadd.f32 %v500, %v560
      %v576 = vadd.f32 %v501, %v563
      %v577 = vadd.f32 %v502, %v566
      %v578 = vadd.f32 %v503, %v569
      %v579 = vld [vmem:[#allocation2 + $0x1] sm:$0xff]
      %v580 = vld [vmem:[#allocation2 + $0x11] sm:$0xff]
      %v581 = vld [vmem:[#allocation2 + $0x21] sm:$0xff]
      %v582 = vld [vmem:[#allocation2 + $0x31] sm:$0xff]
      %v583 = vld [vmem:[#allocation2 + $0x41] sm:$0xff]
      %v584 = vld [vmem:[#allocation2 + $0x51] sm:$0xff]
      %v585 = vld [vmem:[#allocation2 + $0x61] sm:$0xff]
      %v586 = vld [vmem:[#allocation2 + $0x71] sm:$0xff]
      %v587 = vld [vmem:[%s293 + $0x1] sm:$0xff]
      %v588 = vld [vmem:[%s293 + $0x11] sm:$0xff]
      %v589 = vld [vmem:[%s293 + $0x21] sm:$0xff]
      %v590 = vld [vmem:[%s293 + $0x31] sm:$0xff]
      %v591 = vld [vmem:[%s293 + $0x41] sm:$0xff]
      %v592 = vld [vmem:[%s293 + $0x51] sm:$0xff]
      %v593 = vld [vmem:[%s293 + $0x61] sm:$0xff]
      %v594 = vld [vmem:[%s293 + $0x71] sm:$0xff]
      %s595 = scalar_lea.vmem %s4, 16
      %v596 = vld [vmem:[%s595] sm:$0xff]
      %v597 = vld [vmem:[%s595 + $0x8] sm:$0xff]
      %v599 = vsel %vm378, %v579, 0
      %v602 = vsel %vm378, %v580, 0
      %v605 = vsel %vm378, %v581, 0
      %v608 = vsel %vm378, %v582, 0
      %v611 = vsel %vm378, %v583, 0
      %v614 = vsel %vm378, %v584, 0
      %v617 = vsel %vm378, %v585, 0
      %v620 = vsel %vm378, %v586, 0
      %622 = vmatpush.msra.mxu0 0.0
      %623 = vmatpush.msra.mxu0 0.0
      %624 = vmatpush.msra.mxu0 0.0
      %625 = vmatpush.msra.mxu0 0.0
      %626 = vmatpush.msra.mxu0 0.0
      %627 = vmatpush.msra.mxu0 0.0
      %628 = vmatpush.msra.mxu0 0.0
      %629 = vmatpush.msra.mxu0 0.0
      %630 = vmatpush.msra.mxu0 0.0
      %631 = vmatpush.msra.mxu0 0.0
      %632 = vmatpush.msra.mxu0 0.0
      %633 = vmatpush.msra.mxu0 0.0
      %634 = vmatpush.msra.mxu0 0.0
      %635 = vmatpush.msra.mxu0 0.0
      %636 = vmatpush.msra.mxu0 %v597
      %637 = vmatpush.msra.mxu0 %v596
      %638 = vmatmul.f32.gmra.mxu0 %v599
      %v639 = vpop.f32.mrf.mxu0
      %v640 = vadd.f32 0.0, %v639
      %641 = vmatmul.f32.gmra.mxu0 %v602
      %v642 = vpop.f32.mrf.mxu0
      %v643 = vadd.f32 0.0, %v642
      %644 = vmatmul.f32.gmra.mxu0 %v605
      %v645 = vpop.f32.mrf.mxu0
      %v646 = vadd.f32 0.0, %v645
      %647 = vmatmul.f32.gmra.mxu0 %v608
      %v648 = vpop.f32.mrf.mxu0
      %v649 = vadd.f32 0.0, %v648
      %650 = vmatmul.f32.gmra.mxu0 %v611
      %v651 = vpop.f32.mrf.mxu0
      %v652 = vadd.f32 0.0, %v651
      %653 = vmatmul.f32.gmra.mxu0 %v614
      %v654 = vpop.f32.mrf.mxu0
      %v655 = vadd.f32 0.0, %v654
      %656 = vmatmul.f32.gmra.mxu0 %v617
      %v657 = vpop.f32.mrf.mxu0
      %v658 = vadd.f32 0.0, %v657
      %659 = vmatmul.f32.gmra.mxu0 %v620
      %v660 = vpop.f32.mrf.mxu0
      %v661 = vadd.f32 0.0, %v660
      %662 = vdwg.mxu0
      %v663 = vadd.f32 %v571, %v640
      %v664 = vadd.f32 %v572, %v643
      %v665 = vadd.f32 %v573, %v646
      %v666 = vadd.f32 %v574, %v649
      %v667 = vadd.f32 %v575, %v652
      %v668 = vadd.f32 %v576, %v655
      %v669 = vadd.f32 %v577, %v658
      %v670 = vadd.f32 %v578, %v661
      %s671 = scalar_lea.vmem %s5, 16
      %v672 = vld [vmem:[%s671] sm:$0xff]
      %v673 = vld [vmem:[%s671 + $0x8] sm:$0xff]
      %v675 = vsel %vm378, %v587, 0
      %v678 = vsel %vm378, %v588, 0
      %v681 = vsel %vm378, %v589, 0
      %v684 = vsel %vm378, %v590, 0
      %v687 = vsel %vm378, %v591, 0
      %v690 = vsel %vm378, %v592, 0
      %v693 = vsel %vm378, %v593, 0
      %v696 = vsel %vm378, %v594, 0
      %698 = vmatpush.msra.mxu0 0.0
      %699 = vmatpush.msra.mxu0 0.0
      %700 = vmatpush.msra.mxu0 0.0
      %701 = vmatpush.msra.mxu0 0.0
      %702 = vmatpush.msra.mxu0 0.0
      %703 = vmatpush.msra.mxu0 0.0
      %704 = vmatpush.msra.mxu0 0.0
      %705 = vmatpush.msra.mxu0 0.0
      %706 = vmatpush.msra.mxu0 0.0
      %707 = vmatpush.msra.mxu0 0.0
      %708 = vmatpush.msra.mxu0 0.0
      %709 = vmatpush.msra.mxu0 0.0
      %710 = vmatpush.msra.mxu0 0.0
      %711 = vmatpush.msra.mxu0 0.0
      %712 = vmatpush.msra.mxu0 %v673
      %713 = vmatpush.msra.mxu0 %v672
      %714 = vmatmul.f32.gmra.mxu0 %v675
      %v715 = vpop.f32.mrf.mxu0
      %v716 = vadd.f32 0.0, %v715
      %717 = vmatmul.f32.gmra.mxu0 %v678
      %v718 = vpop.f32.mrf.mxu0
      %v719 = vadd.f32 0.0, %v718
      %720 = vmatmul.f32.gmra.mxu0 %v681
      %v721 = vpop.f32.mrf.mxu0
      %v722 = vadd.f32 0.0, %v721
      %723 = vmatmul.f32.gmra.mxu0 %v684
      %v724 = vpop.f32.mrf.mxu0
      %v725 = vadd.f32 0.0, %v724
      %726 = vmatmul.f32.gmra.mxu0 %v687
      %v727 = vpop.f32.mrf.mxu0
      %v728 = vadd.f32 0.0, %v727
      %729 = vmatmul.f32.gmra.mxu0 %v690
      %v730 = vpop.f32.mrf.mxu0
      %v731 = vadd.f32 0.0, %v730
      %732 = vmatmul.f32.gmra.mxu0 %v693
      %v733 = vpop.f32.mrf.mxu0
      %v734 = vadd.f32 0.0, %v733
      %735 = vmatmul.f32.gmra.mxu0 %v696
      %v736 = vpop.f32.mrf.mxu0
      %v737 = vadd.f32 0.0, %v736
      %738 = vdwg.mxu0
      %v739 = vadd.f32 %v663, %v716
      %v740 = vadd.f32 %v664, %v719
      %v741 = vadd.f32 %v665, %v722
      %v742 = vadd.f32 %v666, %v725
      %v743 = vadd.f32 %v667, %v728
      %v744 = vadd.f32 %v668, %v731
      %v745 = vadd.f32 %v669, %v734
      %v746 = vadd.f32 %v670, %v737
      %v747 = vld [vmem:[#allocation2 + $0x2] sm:$0xff]
      %v748 = vld [vmem:[#allocation2 + $0x12] sm:$0xff]
      %v749 = vld [vmem:[#allocation2 + $0x22] sm:$0xff]
      %v750 = vld [vmem:[#allocation2 + $0x32] sm:$0xff]
      %v751 = vld [vmem:[#allocation2 + $0x42] sm:$0xff]
      %v752 = vld [vmem:[#allocation2 + $0x52] sm:$0xff]
      %v753 = vld [vmem:[#allocation2 + $0x62] sm:$0xff]
      %v754 = vld [vmem:[#allocation2 + $0x72] sm:$0xff]
      %v755 = vld [vmem:[%s293 + $0x2] sm:$0xff]
      %v756 = vld [vmem:[%s293 + $0x12] sm:$0xff]
      %v757 = vld [vmem:[%s293 + $0x22] sm:$0xff]
      %v758 = vld [vmem:[%s293 + $0x32] sm:$0xff]
      %v759 = vld [vmem:[%s293 + $0x42] sm:$0xff]
      %v760 = vld [vmem:[%s293 + $0x52] sm:$0xff]
      %v761 = vld [vmem:[%s293 + $0x62] sm:$0xff]
      %v762 = vld [vmem:[%s293 + $0x72] sm:$0xff]
      %s763 = scalar_lea.vmem %s4, 32
      %v764 = vld [vmem:[%s763] sm:$0xff]
      %v765 = vld [vmem:[%s763 + $0x8] sm:$0xff]
      %v767 = vsel %vm378, %v747, 0
      %v770 = vsel %vm378, %v748, 0
      %v773 = vsel %vm378, %v749, 0
      %v776 = vsel %vm378, %v750, 0
      %v779 = vsel %vm378, %v751, 0
      %v782 = vsel %vm378, %v752, 0
      %v785 = vsel %vm378, %v753, 0
      %v788 = vsel %vm378, %v754, 0
      %790 = vmatpush.msra.mxu0 0.0
      %791 = vmatpush.msra.mxu0 0.0
      %792 = vmatpush.msra.mxu0 0.0
      %793 = vmatpush.msra.mxu0 0.0
      %794 = vmatpush.msra.mxu0 0.0
      %795 = vmatpush.msra.mxu0 0.0
      %796 = vmatpush.msra.mxu0 0.0
      %797 = vmatpush.msra.mxu0 0.0
      %798 = vmatpush.msra.mxu0 0.0
      %799 = vmatpush.msra.mxu0 0.0
      %800 = vmatpush.msra.mxu0 0.0
      %801 = vmatpush.msra.mxu0 0.0
      %802 = vmatpush.msra.mxu0 0.0
      %803 = vmatpush.msra.mxu0 0.0
      %804 = vmatpush.msra.mxu0 %v765
      %805 = vmatpush.msra.mxu0 %v764
      %806 = vmatmul.f32.gmra.mxu0 %v767
      %v807 = vpop.f32.mrf.mxu0
      %v808 = vadd.f32 0.0, %v807
      %809 = vmatmul.f32.gmra.mxu0 %v770
      %v810 = vpop.f32.mrf.mxu0
      %v811 = vadd.f32 0.0, %v810
      %812 = vmatmul.f32.gmra.mxu0 %v773
      %v813 = vpop.f32.mrf.mxu0
      %v814 = vadd.f32 0.0, %v813
      %815 = vmatmul.f32.gmra.mxu0 %v776
      %v816 = vpop.f32.mrf.mxu0
      %v817 = vadd.f32 0.0, %v816
      %818 = vmatmul.f32.gmra.mxu0 %v779
      %v819 = vpop.f32.mrf.mxu0
      %v820 = vadd.f32 0.0, %v819
      %821 = vmatmul.f32.gmra.mxu0 %v782
      %v822 = vpop.f32.mrf.mxu0
      %v823 = vadd.f32 0.0, %v822
      %824 = vmatmul.f32.gmra.mxu0 %v785
      %v825 = vpop.f32.mrf.mxu0
      %v826 = vadd.f32 0.0, %v825
      %827 = vmatmul.f32.gmra.mxu0 %v788
      %v828 = vpop.f32.mrf.mxu0
      %v829 = vadd.f32 0.0, %v828
      %830 = vdwg.mxu0
      %v831 = vadd.f32 %v739, %v808
      %v832 = vadd.f32 %v740, %v811
      %v833 = vadd.f32 %v741, %v814
      %v834 = vadd.f32 %v742, %v817
      %v835 = vadd.f32 %v743, %v820
      %v836 = vadd.f32 %v744, %v823
      %v837 = vadd.f32 %v745, %v826
      %v838 = vadd.f32 %v746, %v829
      %s839 = scalar_lea.vmem %s5, 32
      %v840 = vld [vmem:[%s839] sm:$0xff]
      %v841 = vld [vmem:[%s839 + $0x8] sm:$0xff]
      %v843 = vsel %vm378, %v755, 0
      %v846 = vsel %vm378, %v756, 0
      %v849 = vsel %vm378, %v757, 0
      %v852 = vsel %vm378, %v758, 0
      %v855 = vsel %vm378, %v759, 0
      %v858 = vsel %vm378, %v760, 0
      %v861 = vsel %vm378, %v761, 0
      %v864 = vsel %vm378, %v762, 0
      %866 = vmatpush.msra.mxu0 0.0
      %867 = vmatpush.msra.mxu0 0.0
      %868 = vmatpush.msra.mxu0 0.0
      %869 = vmatpush.msra.mxu0 0.0
      %870 = vmatpush.msra.mxu0 0.0
      %871 = vmatpush.msra.mxu0 0.0
      %872 = vmatpush.msra.mxu0 0.0
      %873 = vmatpush.msra.mxu0 0.0
      %874 = vmatpush.msra.mxu0 0.0
      %875 = vmatpush.msra.mxu0 0.0
      %876 = vmatpush.msra.mxu0 0.0
      %877 = vmatpush.msra.mxu0 0.0
      %878 = vmatpush.msra.mxu0 0.0
      %879 = vmatpush.msra.mxu0 0.0
      %880 = vmatpush.msra.mxu0 %v841
      %881 = vmatpush.msra.mxu0 %v840
      %882 = vmatmul.f32.gmra.mxu0 %v843
      %v883 = vpop.f32.mrf.mxu0
      %v884 = vadd.f32 0.0, %v883
      %885 = vmatmul.f32.gmra.mxu0 %v846
      %v886 = vpop.f32.mrf.mxu0
      %v887 = vadd.f32 0.0, %v886
      %888 = vmatmul.f32.gmra.mxu0 %v849
      %v889 = vpop.f32.mrf.mxu0
      %v890 = vadd.f32 0.0, %v889
      %891 = vmatmul.f32.gmra.mxu0 %v852
      %v892 = vpop.f32.mrf.mxu0
      %v893 = vadd.f32 0.0, %v892
      %894 = vmatmul.f32.gmra.mxu0 %v855
      %v895 = vpop.f32.mrf.mxu0
      %v896 = vadd.f32 0.0, %v895
      %897 = vmatmul.f32.gmra.mxu0 %v858
      %v898 = vpop.f32.mrf.mxu0
      %v899 = vadd.f32 0.0, %v898
      %900 = vmatmul.f32.gmra.mxu0 %v861
      %v901 = vpop.f32.mrf.mxu0
      %v902 = vadd.f32 0.0, %v901
      %903 = vmatmul.f32.gmra.mxu0 %v864
      %v904 = vpop.f32.mrf.mxu0
      %v905 = vadd.f32 0.0, %v904
      %906 = vdwg.mxu0
      %v907 = vadd.f32 %v831, %v884
      %v908 = vadd.f32 %v832, %v887
      %v909 = vadd.f32 %v833, %v890
      %v910 = vadd.f32 %v834, %v893
      %v911 = vadd.f32 %v835, %v896
      %v912 = vadd.f32 %v836, %v899
      %v913 = vadd.f32 %v837, %v902
      %v914 = vadd.f32 %v838, %v905
      %v915 = vld [vmem:[%s400] sm:$0xff]
      %v916 = vld [vmem:[%s400 + $0x10] sm:$0xff]
      %v917 = vld [vmem:[%s400 + $0x20] sm:$0xff]
      %v918 = vld [vmem:[%s400 + $0x30] sm:$0xff]
      %v919 = vld [vmem:[%s400 + $0x40] sm:$0xff]
      %v920 = vld [vmem:[%s400 + $0x50] sm:$0xff]
      %v921 = vld [vmem:[%s400 + $0x60] sm:$0xff]
      %v922 = vld [vmem:[%s400 + $0x70] sm:$0xff]
      %s923 = scalar_lea.vmem %s293, 16
      %v924 = vld [vmem:[%s923] sm:$0xff]
      %v925 = vld [vmem:[%s923 + $0x10] sm:$0xff]
      %v926 = vld [vmem:[%s923 + $0x20] sm:$0xff]
      %v927 = vld [vmem:[%s923 + $0x30] sm:$0xff]
      %v928 = vld [vmem:[%s923 + $0x40] sm:$0xff]
      %v929 = vld [vmem:[%s923 + $0x50] sm:$0xff]
      %v930 = vld [vmem:[%s923 + $0x60] sm:$0xff]
      %v931 = vld [vmem:[%s923 + $0x70] sm:$0xff]
      %s932 = scalar_lea.vmem %s4, 48
      %v933 = vld [vmem:[%s932] sm:$0xff]
      %v934 = vld [vmem:[%s932 + $0x8] sm:$0xff]
      %v936 = vsel %vm378, %v915, 0
      %v939 = vsel %vm378, %v916, 0
      %v942 = vsel %vm378, %v917, 0
      %v945 = vsel %vm378, %v918, 0
      %v948 = vsel %vm378, %v919, 0
      %v951 = vsel %vm378, %v920, 0
      %v954 = vsel %vm378, %v921, 0
      %v957 = vsel %vm378, %v922, 0
      %959 = vmatpush.msra.mxu0 0.0
      %960 = vmatpush.msra.mxu0 0.0
      %961 = vmatpush.msra.mxu0 0.0
      %962 = vmatpush.msra.mxu0 0.0
      %963 = vmatpush.msra.mxu0 0.0
      %964 = vmatpush.msra.mxu0 0.0
      %965 = vmatpush.msra.mxu0 0.0
      %966 = vmatpush.msra.mxu0 0.0
      %967 = vmatpush.msra.mxu0 0.0
      %968 = vmatpush.msra.mxu0 0.0
      %969 = vmatpush.msra.mxu0 0.0
      %970 = vmatpush.msra.mxu0 0.0
      %971 = vmatpush.msra.mxu0 0.0
      %972 = vmatpush.msra.mxu0 0.0
      %973 = vmatpush.msra.mxu0 %v934
      %974 = vmatpush.msra.mxu0 %v933
      %975 = vmatmul.f32.gmra.mxu0 %v936
      %v976 = vpop.f32.mrf.mxu0
      %v977 = vadd.f32 0.0, %v976
      %978 = vmatmul.f32.gmra.mxu0 %v939
      %v979 = vpop.f32.mrf.mxu0
      %v980 = vadd.f32 0.0, %v979
      %981 = vmatmul.f32.gmra.mxu0 %v942
      %v982 = vpop.f32.mrf.mxu0
      %v983 = vadd.f32 0.0, %v982
      %984 = vmatmul.f32.gmra.mxu0 %v945
      %v985 = vpop.f32.mrf.mxu0
      %v986 = vadd.f32 0.0, %v985
      %987 = vmatmul.f32.gmra.mxu0 %v948
      %v988 = vpop.f32.mrf.mxu0
      %v989 = vadd.f32 0.0, %v988
      %990 = vmatmul.f32.gmra.mxu0 %v951
      %v991 = vpop.f32.mrf.mxu0
      %v992 = vadd.f32 0.0, %v991
      %993 = vmatmul.f32.gmra.mxu0 %v954
      %v994 = vpop.f32.mrf.mxu0
      %v995 = vadd.f32 0.0, %v994
      %996 = vmatmul.f32.gmra.mxu0 %v957
      %v997 = vpop.f32.mrf.mxu0
      %v998 = vadd.f32 0.0, %v997
      %999 = vdwg.mxu0
      %v1000 = vadd.f32 %v907, %v977
      %v1001 = vadd.f32 %v908, %v980
      %v1002 = vadd.f32 %v909, %v983
      %v1003 = vadd.f32 %v910, %v986
      %v1004 = vadd.f32 %v911, %v989
      %v1005 = vadd.f32 %v912, %v992
      %v1006 = vadd.f32 %v913, %v995
      %v1007 = vadd.f32 %v914, %v998
      %s1008 = scalar_lea.vmem %s5, 48
      %v1009 = vld [vmem:[%s1008] sm:$0xff]
      %v1010 = vld [vmem:[%s1008 + $0x8] sm:$0xff]
      %v1012 = vsel %vm378, %v924, 0
      %v1015 = vsel %vm378, %v925, 0
      %v1018 = vsel %vm378, %v926, 0
      %v1021 = vsel %vm378, %v927, 0
      %v1024 = vsel %vm378, %v928, 0
      %v1027 = vsel %vm378, %v929, 0
      %v1030 = vsel %vm378, %v930, 0
      %v1033 = vsel %vm378, %v931, 0
      %1035 = vmatpush.msra.mxu0 0.0
      %1036 = vmatpush.msra.mxu0 0.0
      %1037 = vmatpush.msra.mxu0 0.0
      %1038 = vmatpush.msra.mxu0 0.0
      %1039 = vmatpush.msra.mxu0 0.0
      %1040 = vmatpush.msra.mxu0 0.0
      %1041 = vmatpush.msra.mxu0 0.0
      %1042 = vmatpush.msra.mxu0 0.0
      %1043 = vmatpush.msra.mxu0 0.0
      %1044 = vmatpush.msra.mxu0 0.0
      %1045 = vmatpush.msra.mxu0 0.0
      %1046 = vmatpush.msra.mxu0 0.0
      %1047 = vmatpush.msra.mxu0 0.0
      %1048 = vmatpush.msra.mxu0 0.0
      %1049 = vmatpush.msra.mxu0 %v1010
      %1050 = vmatpush.msra.mxu0 %v1009
      %1051 = vmatmul.f32.gmra.mxu0 %v1012
      %v1052 = vpop.f32.mrf.mxu0
      %v1053 = vadd.f32 0.0, %v1052
      %1054 = vmatmul.f32.gmra.mxu0 %v1015
      %v1055 = vpop.f32.mrf.mxu0
      %v1056 = vadd.f32 0.0, %v1055
      %1057 = vmatmul.f32.gmra.mxu0 %v1018
      %v1058 = vpop.f32.mrf.mxu0
      %v1059 = vadd.f32 0.0, %v1058
      %1060 = vmatmul.f32.gmra.mxu0 %v1021
      %v1061 = vpop.f32.mrf.mxu0
      %v1062 = vadd.f32 0.0, %v1061
      %1063 = vmatmul.f32.gmra.mxu0 %v1024
      %v1064 = vpop.f32.mrf.mxu0
      %v1065 = vadd.f32 0.0, %v1064
      %1066 = vmatmul.f32.gmra.mxu0 %v1027
      %v1067 = vpop.f32.mrf.mxu0
      %v1068 = vadd.f32 0.0, %v1067
      %1069 = vmatmul.f32.gmra.mxu0 %v1030
      %v1070 = vpop.f32.mrf.mxu0
      %v1071 = vadd.f32 0.0, %v1070
      %1072 = vmatmul.f32.gmra.mxu0 %v1033
      %v1073 = vpop.f32.mrf.mxu0
      %v1074 = vadd.f32 0.0, %v1073
      %1075 = vdwg.mxu0
      %v1076 = vadd.f32 %v1000, %v1053
      %v1077 = vadd.f32 %v1001, %v1056
      %v1078 = vadd.f32 %v1002, %v1059
      %v1079 = vadd.f32 %v1003, %v1062
      %v1080 = vadd.f32 %v1004, %v1065
      %v1081 = vadd.f32 %v1005, %v1068
      %v1082 = vadd.f32 %v1006, %v1071
      %v1083 = vadd.f32 %v1007, %v1074
      %v1084 = vld [vmem:[%s400 + $0x1] sm:$0xff]
      %v1085 = vld [vmem:[%s400 + $0x11] sm:$0xff]
      %v1086 = vld [vmem:[%s400 + $0x21] sm:$0xff]
      %v1087 = vld [vmem:[%s400 + $0x31] sm:$0xff]
      %v1088 = vld [vmem:[%s400 + $0x41] sm:$0xff]
      %v1089 = vld [vmem:[%s400 + $0x51] sm:$0xff]
      %v1090 = vld [vmem:[%s400 + $0x61] sm:$0xff]
      %v1091 = vld [vmem:[%s400 + $0x71] sm:$0xff]
      %v1092 = vld [vmem:[%s923 + $0x1] sm:$0xff]
      %v1093 = vld [vmem:[%s923 + $0x11] sm:$0xff]
      %v1094 = vld [vmem:[%s923 + $0x21] sm:$0xff]
      %v1095 = vld [vmem:[%s923 + $0x31] sm:$0xff]
      %v1096 = vld [vmem:[%s923 + $0x41] sm:$0xff]
      %v1097 = vld [vmem:[%s923 + $0x51] sm:$0xff]
      %v1098 = vld [vmem:[%s923 + $0x61] sm:$0xff]
      %v1099 = vld [vmem:[%s923 + $0x71] sm:$0xff]
      %s1100 = scalar_lea.vmem %s4, 64
      %v1101 = vld [vmem:[%s1100] sm:$0xff]
      %v1102 = vld [vmem:[%s1100 + $0x8] sm:$0xff]
      %v1104 = vsel %vm378, %v1084, 0
      %v1107 = vsel %vm378, %v1085, 0
      %v1110 = vsel %vm378, %v1086, 0
      %v1113 = vsel %vm378, %v1087, 0
      %v1116 = vsel %vm378, %v1088, 0
      %v1119 = vsel %vm378, %v1089, 0
      %v1122 = vsel %vm378, %v1090, 0
      %v1125 = vsel %vm378, %v1091, 0
      %1127 = vmatpush.msra.mxu0 0.0
      %1128 = vmatpush.msra.mxu0 0.0
      %1129 = vmatpush.msra.mxu0 0.0
      %1130 = vmatpush.msra.mxu0 0.0
      %1131 = vmatpush.msra.mxu0 0.0
      %1132 = vmatpush.msra.mxu0 0.0
      %1133 = vmatpush.msra.mxu0 0.0
      %1134 = vmatpush.msra.mxu0 0.0
      %1135 = vmatpush.msra.mxu0 0.0
      %1136 = vmatpush.msra.mxu0 0.0
      %1137 = vmatpush.msra.mxu0 0.0
      %1138 = vmatpush.msra.mxu0 0.0
      %1139 = vmatpush.msra.mxu0 0.0
      %1140 = vmatpush.msra.mxu0 0.0
      %1141 = vmatpush.msra.mxu0 %v1102
      %1142 = vmatpush.msra.mxu0 %v1101
      %1143 = vmatmul.f32.gmra.mxu0 %v1104
      %v1144 = vpop.f32.mrf.mxu0
      %v1145 = vadd.f32 0.0, %v1144
      %1146 = vmatmul.f32.gmra.mxu0 %v1107
      %v1147 = vpop.f32.mrf.mxu0
      %v1148 = vadd.f32 0.0, %v1147
      %1149 = vmatmul.f32.gmra.mxu0 %v1110
      %v1150 = vpop.f32.mrf.mxu0
      %v1151 = vadd.f32 0.0, %v1150
      %1152 = vmatmul.f32.gmra.mxu0 %v1113
      %v1153 = vpop.f32.mrf.mxu0
      %v1154 = vadd.f32 0.0, %v1153
      %1155 = vmatmul.f32.gmra.mxu0 %v1116
      %v1156 = vpop.f32.mrf.mxu0
      %v1157 = vadd.f32 0.0, %v1156
      %1158 = vmatmul.f32.gmra.mxu0 %v1119
      %v1159 = vpop.f32.mrf.mxu0
      %v1160 = vadd.f32 0.0, %v1159
      %1161 = vmatmul.f32.gmra.mxu0 %v1122
      %v1162 = vpop.f32.mrf.mxu0
      %v1163 = vadd.f32 0.0, %v1162
      %1164 = vmatmul.f32.gmra.mxu0 %v1125
      %v1165 = vpop.f32.mrf.mxu0
      %v1166 = vadd.f32 0.0, %v1165
      %1167 = vdwg.mxu0
      %v1168 = vadd.f32 %v1076, %v1145
      %v1169 = vadd.f32 %v1077, %v1148
      %v1170 = vadd.f32 %v1078, %v1151
      %v1171 = vadd.f32 %v1079, %v1154
      %v1172 = vadd.f32 %v1080, %v1157
      %v1173 = vadd.f32 %v1081, %v1160
      %v1174 = vadd.f32 %v1082, %v1163
      %v1175 = vadd.f32 %v1083, %v1166
      %s1176 = scalar_lea.vmem %s5, 64
      %v1177 = vld [vmem:[%s1176] sm:$0xff]
      %v1178 = vld [vmem:[%s1176 + $0x8] sm:$0xff]
      %v1180 = vsel %vm378, %v1092, 0
      %v1183 = vsel %vm378, %v1093, 0
      %v1186 = vsel %vm378, %v1094, 0
      %v1189 = vsel %vm378, %v1095, 0
      %v1192 = vsel %vm378, %v1096, 0
      %v1195 = vsel %vm378, %v1097, 0
      %v1198 = vsel %vm378, %v1098, 0
      %v1201 = vsel %vm378, %v1099, 0
      %1203 = vmatpush.msra.mxu0 0.0
      %1204 = vmatpush.msra.mxu0 0.0
      %1205 = vmatpush.msra.mxu0 0.0
      %1206 = vmatpush.msra.mxu0 0.0
      %1207 = vmatpush.msra.mxu0 0.0
      %1208 = vmatpush.msra.mxu0 0.0
      %1209 = vmatpush.msra.mxu0 0.0
      %1210 = vmatpush.msra.mxu0 0.0
      %1211 = vmatpush.msra.mxu0 0.0
      %1212 = vmatpush.msra.mxu0 0.0
      %1213 = vmatpush.msra.mxu0 0.0
      %1214 = vmatpush.msra.mxu0 0.0
      %1215 = vmatpush.msra.mxu0 0.0
      %1216 = vmatpush.msra.mxu0 0.0
      %1217 = vmatpush.msra.mxu0 %v1178
      %1218 = vmatpush.msra.mxu0 %v1177
      %1219 = vmatmul.f32.gmra.mxu0 %v1180
      %v1220 = vpop.f32.mrf.mxu0
      %v1221 = vadd.f32 0.0, %v1220
      %1222 = vmatmul.f32.gmra.mxu0 %v1183
      %v1223 = vpop.f32.mrf.mxu0
      %v1224 = vadd.f32 0.0, %v1223
      %1225 = vmatmul.f32.gmra.mxu0 %v1186
      %v1226 = vpop.f32.mrf.mxu0
      %v1227 = vadd.f32 0.0, %v1226
      %1228 = vmatmul.f32.gmra.mxu0 %v1189
      %v1229 = vpop.f32.mrf.mxu0
      %v1230 = vadd.f32 0.0, %v1229
      %1231 = vmatmul.f32.gmra.mxu0 %v1192
      %v1232 = vpop.f32.mrf.mxu0
      %v1233 = vadd.f32 0.0, %v1232
      %1234 = vmatmul.f32.gmra.mxu0 %v1195
      %v1235 = vpop.f32.mrf.mxu0
      %v1236 = vadd.f32 0.0, %v1235
      %1237 = vmatmul.f32.gmra.mxu0 %v1198
      %v1238 = vpop.f32.mrf.mxu0
      %v1239 = vadd.f32 0.0, %v1238
      %1240 = vmatmul.f32.gmra.mxu0 %v1201
      %v1241 = vpop.f32.mrf.mxu0
      %v1242 = vadd.f32 0.0, %v1241
      %1243 = vdwg.mxu0
      %v1244 = vadd.f32 %v1168, %v1221
      %v1245 = vadd.f32 %v1169, %v1224
      %v1246 = vadd.f32 %v1170, %v1227
      %v1247 = vadd.f32 %v1171, %v1230
      %v1248 = vadd.f32 %v1172, %v1233
      %v1249 = vadd.f32 %v1173, %v1236
      %v1250 = vadd.f32 %v1174, %v1239
      %v1251 = vadd.f32 %v1175, %v1242
      %v1252 = vld [vmem:[%s400 + $0x2] sm:$0xff]
      %v1253 = vld [vmem:[%s400 + $0x12] sm:$0xff]
      %v1254 = vld [vmem:[%s400 + $0x22] sm:$0xff]
      %v1255 = vld [vmem:[%s400 + $0x32] sm:$0xff]
      %v1256 = vld [vmem:[%s400 + $0x42] sm:$0xff]
      %v1257 = vld [vmem:[%s400 + $0x52] sm:$0xff]
      %v1258 = vld [vmem:[%s400 + $0x62] sm:$0xff]
      %v1259 = vld [vmem:[%s400 + $0x72] sm:$0xff]
      %v1260 = vld [vmem:[%s923 + $0x2] sm:$0xff]
      %v1261 = vld [vmem:[%s923 + $0x12] sm:$0xff]
      %v1262 = vld [vmem:[%s923 + $0x22] sm:$0xff]
      %v1263 = vld [vmem:[%s923 + $0x32] sm:$0xff]
      %v1264 = vld [vmem:[%s923 + $0x42] sm:$0xff]
      %v1265 = vld [vmem:[%s923 + $0x52] sm:$0xff]
      %v1266 = vld [vmem:[%s923 + $0x62] sm:$0xff]
      %v1267 = vld [vmem:[%s923 + $0x72] sm:$0xff]
      %s1268 = scalar_lea.vmem %s4, 80
      %v1269 = vld [vmem:[%s1268] sm:$0xff]
      %v1270 = vld [vmem:[%s1268 + $0x8] sm:$0xff]
      %v1272 = vsel %vm378, %v1252, 0
      %v1275 = vsel %vm378, %v1253, 0
      %v1278 = vsel %vm378, %v1254, 0
      %v1281 = vsel %vm378, %v1255, 0
      %v1284 = vsel %vm378, %v1256, 0
      %v1287 = vsel %vm378, %v1257, 0
      %v1290 = vsel %vm378, %v1258, 0
      %v1293 = vsel %vm378, %v1259, 0
      %1295 = vmatpush.msra.mxu0 0.0
      %1296 = vmatpush.msra.mxu0 0.0
      %1297 = vmatpush.msra.mxu0 0.0
      %1298 = vmatpush.msra.mxu0 0.0
      %1299 = vmatpush.msra.mxu0 0.0
      %1300 = vmatpush.msra.mxu0 0.0
      %1301 = vmatpush.msra.mxu0 0.0
      %1302 = vmatpush.msra.mxu0 0.0
      %1303 = vmatpush.msra.mxu0 0.0
      %1304 = vmatpush.msra.mxu0 0.0
      %1305 = vmatpush.msra.mxu0 0.0
      %1306 = vmatpush.msra.mxu0 0.0
      %1307 = vmatpush.msra.mxu0 0.0
      %1308 = vmatpush.msra.mxu0 0.0
      %1309 = vmatpush.msra.mxu0 %v1270
      %1310 = vmatpush.msra.mxu0 %v1269
      %1311 = vmatmul.f32.gmra.mxu0 %v1272
      %v1312 = vpop.f32.mrf.mxu0
      %v1313 = vadd.f32 0.0, %v1312
      %1314 = vmatmul.f32.gmra.mxu0 %v1275
      %v1315 = vpop.f32.mrf.mxu0
      %v1316 = vadd.f32 0.0, %v1315
      %1317 = vmatmul.f32.gmra.mxu0 %v1278
      %v1318 = vpop.f32.mrf.mxu0
      %v1319 = vadd.f32 0.0, %v1318
      %1320 = vmatmul.f32.gmra.mxu0 %v1281
      %v1321 = vpop.f32.mrf.mxu0
      %v1322 = vadd.f32 0.0, %v1321
      %1323 = vmatmul.f32.gmra.mxu0 %v1284
      %v1324 = vpop.f32.mrf.mxu0
      %v1325 = vadd.f32 0.0, %v1324
      %1326 = vmatmul.f32.gmra.mxu0 %v1287
      %v1327 = vpop.f32.mrf.mxu0
      %v1328 = vadd.f32 0.0, %v1327
      %1329 = vmatmul.f32.gmra.mxu0 %v1290
      %v1330 = vpop.f32.mrf.mxu0
      %v1331 = vadd.f32 0.0, %v1330
      %1332 = vmatmul.f32.gmra.mxu0 %v1293
      %v1333 = vpop.f32.mrf.mxu0
      %v1334 = vadd.f32 0.0, %v1333
      %1335 = vdwg.mxu0
      %v1336 = vadd.f32 %v1244, %v1313
      %v1337 = vadd.f32 %v1245, %v1316
      %v1338 = vadd.f32 %v1246, %v1319
      %v1339 = vadd.f32 %v1247, %v1322
      %v1340 = vadd.f32 %v1248, %v1325
      %v1341 = vadd.f32 %v1249, %v1328
      %v1342 = vadd.f32 %v1250, %v1331
      %v1343 = vadd.f32 %v1251, %v1334
      %s1344 = scalar_lea.vmem %s5, 80
      %v1345 = vld [vmem:[%s1344] sm:$0xff]
      %v1346 = vld [vmem:[%s1344 + $0x8] sm:$0xff]
      %v1348 = vsel %vm378, %v1260, 0
      %v1351 = vsel %vm378, %v1261, 0
      %v1354 = vsel %vm378, %v1262, 0
      %v1357 = vsel %vm378, %v1263, 0
      %v1360 = vsel %vm378, %v1264, 0
      %v1363 = vsel %vm378, %v1265, 0
      %v1366 = vsel %vm378, %v1266, 0
      %v1369 = vsel %vm378, %v1267, 0
      %1371 = vmatpush.msra.mxu0 0.0
      %1372 = vmatpush.msra.mxu0 0.0
      %1373 = vmatpush.msra.mxu0 0.0
      %1374 = vmatpush.msra.mxu0 0.0
      %1375 = vmatpush.msra.mxu0 0.0
      %1376 = vmatpush.msra.mxu0 0.0
      %1377 = vmatpush.msra.mxu0 0.0
      %1378 = vmatpush.msra.mxu0 0.0
      %1379 = vmatpush.msra.mxu0 0.0
      %1380 = vmatpush.msra.mxu0 0.0
      %1381 = vmatpush.msra.mxu0 0.0
      %1382 = vmatpush.msra.mxu0 0.0
      %1383 = vmatpush.msra.mxu0 0.0
      %1384 = vmatpush.msra.mxu0 0.0
      %1385 = vmatpush.msra.mxu0 %v1346
      %1386 = vmatpush.msra.mxu0 %v1345
      %1387 = vmatmul.f32.gmra.mxu0 %v1348
      %v1388 = vpop.f32.mrf.mxu0
      %v1389 = vadd.f32 0.0, %v1388
      %1390 = vmatmul.f32.gmra.mxu0 %v1351
      %v1391 = vpop.f32.mrf.mxu0
      %v1392 = vadd.f32 0.0, %v1391
      %1393 = vmatmul.f32.gmra.mxu0 %v1354
      %v1394 = vpop.f32.mrf.mxu0
      %v1395 = vadd.f32 0.0, %v1394
      %1396 = vmatmul.f32.gmra.mxu0 %v1357
      %v1397 = vpop.f32.mrf.mxu0
      %v1398 = vadd.f32 0.0, %v1397
      %1399 = vmatmul.f32.gmra.mxu0 %v1360
      %v1400 = vpop.f32.mrf.mxu0
      %v1401 = vadd.f32 0.0, %v1400
      %1402 = vmatmul.f32.gmra.mxu0 %v1363
      %v1403 = vpop.f32.mrf.mxu0
      %v1404 = vadd.f32 0.0, %v1403
      %1405 = vmatmul.f32.gmra.mxu0 %v1366
      %v1406 = vpop.f32.mrf.mxu0
      %v1407 = vadd.f32 0.0, %v1406
      %1408 = vmatmul.f32.gmra.mxu0 %v1369
      %v1409 = vpop.f32.mrf.mxu0
      %v1410 = vadd.f32 0.0, %v1409
      %1411 = vdwg.mxu0
      %v1412 = vadd.f32 %v1336, %v1389
      %v1413 = vadd.f32 %v1337, %v1392
      %v1414 = vadd.f32 %v1338, %v1395
      %v1415 = vadd.f32 %v1339, %v1398
      %v1416 = vadd.f32 %v1340, %v1401
      %v1417 = vadd.f32 %v1341, %v1404
      %v1418 = vadd.f32 %v1342, %v1407
      %v1419 = vadd.f32 %v1343, %v1410
      %s1420 = scalar_lea.vmem [#allocation2], 32
      %v1421 = vld [vmem:[%s1420] sm:$0xff]
      %v1422 = vld [vmem:[%s1420 + $0x10] sm:$0xff]
      %v1423 = vld [vmem:[%s1420 + $0x20] sm:$0xff]
      %v1424 = vld [vmem:[%s1420 + $0x30] sm:$0xff]
      %v1425 = vld [vmem:[%s1420 + $0x40] sm:$0xff]
      %v1426 = vld [vmem:[%s1420 + $0x50] sm:$0xff]
      %v1427 = vld [vmem:[%s1420 + $0x60] sm:$0xff]
      %v1428 = vld [vmem:[%s1420 + $0x70] sm:$0xff]
      %s1429 = scalar_lea.vmem %s293, 32
      %v1430 = vld [vmem:[%s1429] sm:$0xff]
      %v1431 = vld [vmem:[%s1429 + $0x10] sm:$0xff]
      %v1432 = vld [vmem:[%s1429 + $0x20] sm:$0xff]
      %v1433 = vld [vmem:[%s1429 + $0x30] sm:$0xff]
      %v1434 = vld [vmem:[%s1429 + $0x40] sm:$0xff]
      %v1435 = vld [vmem:[%s1429 + $0x50] sm:$0xff]
      %v1436 = vld [vmem:[%s1429 + $0x60] sm:$0xff]
      %v1437 = vld [vmem:[%s1429 + $0x70] sm:$0xff]
      %s1438 = scalar_lea.vmem %s4, 96
      %v1439 = vld [vmem:[%s1438] sm:$0xff]
      %v1440 = vld [vmem:[%s1438 + $0x8] sm:$0xff]
      %v1442 = vsel %vm378, %v1421, 0
      %v1445 = vsel %vm378, %v1422, 0
      %v1448 = vsel %vm378, %v1423, 0
      %v1451 = vsel %vm378, %v1424, 0
      %v1454 = vsel %vm378, %v1425, 0
      %v1457 = vsel %vm378, %v1426, 0
      %v1460 = vsel %vm378, %v1427, 0
      %v1463 = vsel %vm378, %v1428, 0
      %1465 = vmatpush.msra.mxu0 0.0
      %1466 = vmatpush.msra.mxu0 0.0
      %1467 = vmatpush.msra.mxu0 0.0
      %1468 = vmatpush.msra.mxu0 0.0
      %1469 = vmatpush.msra.mxu0 0.0
      %1470 = vmatpush.msra.mxu0 0.0
      %1471 = vmatpush.msra.mxu0 0.0
      %1472 = vmatpush.msra.mxu0 0.0
      %1473 = vmatpush.msra.mxu0 0.0
      %1474 = vmatpush.msra.mxu0 0.0
      %1475 = vmatpush.msra.mxu0 0.0
      %1476 = vmatpush.msra.mxu0 0.0
      %1477 = vmatpush.msra.mxu0 0.0
      %1478 = vmatpush.msra.mxu0 0.0
      %1479 = vmatpush.msra.mxu0 %v1440
      %1480 = vmatpush.msra.mxu0 %v1439
      %1481 = vmatmul.f32.gmra.mxu0 %v1442
      %v1482 = vpop.f32.mrf.mxu0
      %v1483 = vadd.f32 0.0, %v1482
      %1484 = vmatmul.f32.gmra.mxu0 %v1445
      %v1485 = vpop.f32.mrf.mxu0
      %v1486 = vadd.f32 0.0, %v1485
      %1487 = vmatmul.f32.gmra.mxu0 %v1448
      %v1488 = vpop.f32.mrf.mxu0
      %v1489 = vadd.f32 0.0, %v1488
      %1490 = vmatmul.f32.gmra.mxu0 %v1451
      %v1491 = vpop.f32.mrf.mxu0
      %v1492 = vadd.f32 0.0, %v1491
      %1493 = vmatmul.f32.gmra.mxu0 %v1454
      %v1494 = vpop.f32.mrf.mxu0
      %v1495 = vadd.f32 0.0, %v1494
      %1496 = vmatmul.f32.gmra.mxu0 %v1457
      %v1497 = vpop.f32.mrf.mxu0
      %v1498 = vadd.f32 0.0, %v1497
      %1499 = vmatmul.f32.gmra.mxu0 %v1460
      %v1500 = vpop.f32.mrf.mxu0
      %v1501 = vadd.f32 0.0, %v1500
      %1502 = vmatmul.f32.gmra.mxu0 %v1463
      %v1503 = vpop.f32.mrf.mxu0
      %v1504 = vadd.f32 0.0, %v1503
      %1505 = vdwg.mxu0
      %v1506 = vadd.f32 %v1412, %v1483
      %v1507 = vadd.f32 %v1413, %v1486
      %v1508 = vadd.f32 %v1414, %v1489
      %v1509 = vadd.f32 %v1415, %v1492
      %v1510 = vadd.f32 %v1416, %v1495
      %v1511 = vadd.f32 %v1417, %v1498
      %v1512 = vadd.f32 %v1418, %v1501
      %v1513 = vadd.f32 %v1419, %v1504
      %s1514 = scalar_lea.vmem %s5, 96
      %v1515 = vld [vmem:[%s1514] sm:$0xff]
      %v1516 = vld [vmem:[%s1514 + $0x8] sm:$0xff]
      %v1518 = vsel %vm378, %v1430, 0
      %v1521 = vsel %vm378, %v1431, 0
      %v1524 = vsel %vm378, %v1432, 0
      %v1527 = vsel %vm378, %v1433, 0
      %v1530 = vsel %vm378, %v1434, 0
      %v1533 = vsel %vm378, %v1435, 0
      %v1536 = vsel %vm378, %v1436, 0
      %v1539 = vsel %vm378, %v1437, 0
      %1541 = vmatpush.msra.mxu0 0.0
      %1542 = vmatpush.msra.mxu0 0.0
      %1543 = vmatpush.msra.mxu0 0.0
      %1544 = vmatpush.msra.mxu0 0.0
      %1545 = vmatpush.msra.mxu0 0.0
      %1546 = vmatpush.msra.mxu0 0.0
      %1547 = vmatpush.msra.mxu0 0.0
      %1548 = vmatpush.msra.mxu0 0.0
      %1549 = vmatpush.msra.mxu0 0.0
      %1550 = vmatpush.msra.mxu0 0.0
      %1551 = vmatpush.msra.mxu0 0.0
      %1552 = vmatpush.msra.mxu0 0.0
      %1553 = vmatpush.msra.mxu0 0.0
      %1554 = vmatpush.msra.mxu0 0.0
      %1555 = vmatpush.msra.mxu0 %v1516
      %1556 = vmatpush.msra.mxu0 %v1515
      %1557 = vmatmul.f32.gmra.mxu0 %v1518
      %v1558 = vpop.f32.mrf.mxu0
      %v1559 = vadd.f32 0.0, %v1558
      %1560 = vmatmul.f32.gmra.mxu0 %v1521
      %v1561 = vpop.f32.mrf.mxu0
      %v1562 = vadd.f32 0.0, %v1561
      %1563 = vmatmul.f32.gmra.mxu0 %v1524
      %v1564 = vpop.f32.mrf.mxu0
      %v1565 = vadd.f32 0.0, %v1564
      %1566 = vmatmul.f32.gmra.mxu0 %v1527
      %v1567 = vpop.f32.mrf.mxu0
      %v1568 = vadd.f32 0.0, %v1567
      %1569 = vmatmul.f32.gmra.mxu0 %v1530
      %v1570 = vpop.f32.mrf.mxu0
      %v1571 = vadd.f32 0.0, %v1570
      %1572 = vmatmul.f32.gmra.mxu0 %v1533
      %v1573 = vpop.f32.mrf.mxu0
      %v1574 = vadd.f32 0.0, %v1573
      %1575 = vmatmul.f32.gmra.mxu0 %v1536
      %v1576 = vpop.f32.mrf.mxu0
      %v1577 = vadd.f32 0.0, %v1576
      %1578 = vmatmul.f32.gmra.mxu0 %v1539
      %v1579 = vpop.f32.mrf.mxu0
      %v1580 = vadd.f32 0.0, %v1579
      %1581 = vdwg.mxu0
      %v1582 = vadd.f32 %v1506, %v1559
      %v1583 = vadd.f32 %v1507, %v1562
      %v1584 = vadd.f32 %v1508, %v1565
      %v1585 = vadd.f32 %v1509, %v1568
      %v1586 = vadd.f32 %v1510, %v1571
      %v1587 = vadd.f32 %v1511, %v1574
      %v1588 = vadd.f32 %v1512, %v1577
      %v1589 = vadd.f32 %v1513, %v1580
      %v1590 = vld [vmem:[%s1420 + $0x1] sm:$0xff]
      %v1591 = vld [vmem:[%s1420 + $0x11] sm:$0xff]
      %v1592 = vld [vmem:[%s1420 + $0x21] sm:$0xff]
      %v1593 = vld [vmem:[%s1420 + $0x31] sm:$0xff]
      %v1594 = vld [vmem:[%s1420 + $0x41] sm:$0xff]
      %v1595 = vld [vmem:[%s1420 + $0x51] sm:$0xff]
      %v1596 = vld [vmem:[%s1420 + $0x61] sm:$0xff]
      %v1597 = vld [vmem:[%s1420 + $0x71] sm:$0xff]
      %v1598 = vld [vmem:[%s1429 + $0x1] sm:$0xff]
      %v1599 = vld [vmem:[%s1429 + $0x11] sm:$0xff]
      %v1600 = vld [vmem:[%s1429 + $0x21] sm:$0xff]
      %v1601 = vld [vmem:[%s1429 + $0x31] sm:$0xff]
      %v1602 = vld [vmem:[%s1429 + $0x41] sm:$0xff]
      %v1603 = vld [vmem:[%s1429 + $0x51] sm:$0xff]
      %v1604 = vld [vmem:[%s1429 + $0x61] sm:$0xff]
      %v1605 = vld [vmem:[%s1429 + $0x71] sm:$0xff]
      %s1606 = scalar_lea.vmem %s4, 112
      %v1607 = vld [vmem:[%s1606] sm:$0xff]
      %v1608 = vld [vmem:[%s1606 + $0x8] sm:$0xff]
      %v1610 = vsel %vm378, %v1590, 0
      %v1613 = vsel %vm378, %v1591, 0
      %v1616 = vsel %vm378, %v1592, 0
      %v1619 = vsel %vm378, %v1593, 0
      %v1622 = vsel %vm378, %v1594, 0
      %v1625 = vsel %vm378, %v1595, 0
      %v1628 = vsel %vm378, %v1596, 0
      %v1631 = vsel %vm378, %v1597, 0
      %1633 = vmatpush.msra.mxu0 0.0
      %1634 = vmatpush.msra.mxu0 0.0
      %1635 = vmatpush.msra.mxu0 0.0
      %1636 = vmatpush.msra.mxu0 0.0
      %1637 = vmatpush.msra.mxu0 0.0
      %1638 = vmatpush.msra.mxu0 0.0
      %1639 = vmatpush.msra.mxu0 0.0
      %1640 = vmatpush.msra.mxu0 0.0
      %1641 = vmatpush.msra.mxu0 0.0
      %1642 = vmatpush.msra.mxu0 0.0
      %1643 = vmatpush.msra.mxu0 0.0
      %1644 = vmatpush.msra.mxu0 0.0
      %1645 = vmatpush.msra.mxu0 0.0
      %1646 = vmatpush.msra.mxu0 0.0
      %1647 = vmatpush.msra.mxu0 %v1608
      %1648 = vmatpush.msra.mxu0 %v1607
      %1649 = vmatmul.f32.gmra.mxu0 %v1610
      %v1650 = vpop.f32.mrf.mxu0
      %v1651 = vadd.f32 0.0, %v1650
      %1652 = vmatmul.f32.gmra.mxu0 %v1613
      %v1653 = vpop.f32.mrf.mxu0
      %v1654 = vadd.f32 0.0, %v1653
      %1655 = vmatmul.f32.gmra.mxu0 %v1616
      %v1656 = vpop.f32.mrf.mxu0
      %v1657 = vadd.f32 0.0, %v1656
      %1658 = vmatmul.f32.gmra.mxu0 %v1619
      %v1659 = vpop.f32.mrf.mxu0
      %v1660 = vadd.f32 0.0, %v1659
      %1661 = vmatmul.f32.gmra.mxu0 %v1622
      %v1662 = vpop.f32.mrf.mxu0
      %v1663 = vadd.f32 0.0, %v1662
      %1664 = vmatmul.f32.gmra.mxu0 %v1625
      %v1665 = vpop.f32.mrf.mxu0
      %v1666 = vadd.f32 0.0, %v1665
      %1667 = vmatmul.f32.gmra.mxu0 %v1628
      %v1668 = vpop.f32.mrf.mxu0
      %v1669 = vadd.f32 0.0, %v1668
      %1670 = vmatmul.f32.gmra.mxu0 %v1631
      %v1671 = vpop.f32.mrf.mxu0
      %v1672 = vadd.f32 0.0, %v1671
      %1673 = vdwg.mxu0
      %v1674 = vadd.f32 %v1582, %v1651
      %v1675 = vadd.f32 %v1583, %v1654
      %v1676 = vadd.f32 %v1584, %v1657
      %v1677 = vadd.f32 %v1585, %v1660
      %v1678 = vadd.f32 %v1586, %v1663
      %v1679 = vadd.f32 %v1587, %v1666
      %v1680 = vadd.f32 %v1588, %v1669
      %v1681 = vadd.f32 %v1589, %v1672
      %s1682 = scalar_lea.vmem %s5, 112
      %v1683 = vld [vmem:[%s1682] sm:$0xff]
      %v1684 = vld [vmem:[%s1682 + $0x8] sm:$0xff]
      %v1686 = vsel %vm378, %v1598, 0
      %v1689 = vsel %vm378, %v1599, 0
      %v1692 = vsel %vm378, %v1600, 0
      %v1695 = vsel %vm378, %v1601, 0
      %v1698 = vsel %vm378, %v1602, 0
      %v1701 = vsel %vm378, %v1603, 0
      %v1704 = vsel %vm378, %v1604, 0
      %v1707 = vsel %vm378, %v1605, 0
      %1709 = vmatpush.msra.mxu0 0.0
      %1710 = vmatpush.msra.mxu0 0.0
      %1711 = vmatpush.msra.mxu0 0.0
      %1712 = vmatpush.msra.mxu0 0.0
      %1713 = vmatpush.msra.mxu0 0.0
      %1714 = vmatpush.msra.mxu0 0.0
      %1715 = vmatpush.msra.mxu0 0.0
      %1716 = vmatpush.msra.mxu0 0.0
      %1717 = vmatpush.msra.mxu0 0.0
      %1718 = vmatpush.msra.mxu0 0.0
      %1719 = vmatpush.msra.mxu0 0.0
      %1720 = vmatpush.msra.mxu0 0.0
      %1721 = vmatpush.msra.mxu0 0.0
      %1722 = vmatpush.msra.mxu0 0.0
      %1723 = vmatpush.msra.mxu0 %v1684
      %1724 = vmatpush.msra.mxu0 %v1683
      %1725 = vmatmul.f32.gmra.mxu0 %v1686
      %v1726 = vpop.f32.mrf.mxu0
      %v1727 = vadd.f32 0.0, %v1726
      %1728 = vmatmul.f32.gmra.mxu0 %v1689
      %v1729 = vpop.f32.mrf.mxu0
      %v1730 = vadd.f32 0.0, %v1729
      %1731 = vmatmul.f32.gmra.mxu0 %v1692
      %v1732 = vpop.f32.mrf.mxu0
      %v1733 = vadd.f32 0.0, %v1732
      %1734 = vmatmul.f32.gmra.mxu0 %v1695
      %v1735 = vpop.f32.mrf.mxu0
      %v1736 = vadd.f32 0.0, %v1735
      %1737 = vmatmul.f32.gmra.mxu0 %v1698
      %v1738 = vpop.f32.mrf.mxu0
      %v1739 = vadd.f32 0.0, %v1738
      %1740 = vmatmul.f32.gmra.mxu0 %v1701
      %v1741 = vpop.f32.mrf.mxu0
      %v1742 = vadd.f32 0.0, %v1741
      %1743 = vmatmul.f32.gmra.mxu0 %v1704
      %v1744 = vpop.f32.mrf.mxu0
      %v1745 = vadd.f32 0.0, %v1744
      %1746 = vmatmul.f32.gmra.mxu0 %v1707
      %v1747 = vpop.f32.mrf.mxu0
      %v1748 = vadd.f32 0.0, %v1747
      %1749 = vdwg.mxu0
      %v1750 = vadd.f32 %v1674, %v1727
      %v1751 = vadd.f32 %v1675, %v1730
      %v1752 = vadd.f32 %v1676, %v1733
      %v1753 = vadd.f32 %v1677, %v1736
      %v1754 = vadd.f32 %v1678, %v1739
      %v1755 = vadd.f32 %v1679, %v1742
      %v1756 = vadd.f32 %v1680, %v1745
      %v1757 = vadd.f32 %v1681, %v1748
      %v1758 = vld [vmem:[%s1420 + $0x2] sm:$0xff]
      %v1759 = vld [vmem:[%s1420 + $0x12] sm:$0xff]
      %v1760 = vld [vmem:[%s1420 + $0x22] sm:$0xff]
      %v1761 = vld [vmem:[%s1420 + $0x32] sm:$0xff]
      %v1762 = vld [vmem:[%s1420 + $0x42] sm:$0xff]
      %v1763 = vld [vmem:[%s1420 + $0x52] sm:$0xff]
      %v1764 = vld [vmem:[%s1420 + $0x62] sm:$0xff]
      %v1765 = vld [vmem:[%s1420 + $0x72] sm:$0xff]
      %v1766 = vld [vmem:[%s1429 + $0x2] sm:$0xff]
      %v1767 = vld [vmem:[%s1429 + $0x12] sm:$0xff]
      %v1768 = vld [vmem:[%s1429 + $0x22] sm:$0xff]
      %v1769 = vld [vmem:[%s1429 + $0x32] sm:$0xff]
      %v1770 = vld [vmem:[%s1429 + $0x42] sm:$0xff]
      %v1771 = vld [vmem:[%s1429 + $0x52] sm:$0xff]
      %v1772 = vld [vmem:[%s1429 + $0x62] sm:$0xff]
      %v1773 = vld [vmem:[%s1429 + $0x72] sm:$0xff]
      %s1774 = scalar_lea.vmem %s4, 128
      %v1775 = vld [vmem:[%s1774] sm:$0xff]
      %v1776 = vld [vmem:[%s1774 + $0x8] sm:$0xff]
      %v1778 = vsel %vm378, %v1758, 0
      %v1781 = vsel %vm378, %v1759, 0
      %v1784 = vsel %vm378, %v1760, 0
      %v1787 = vsel %vm378, %v1761, 0
      %v1790 = vsel %vm378, %v1762, 0
      %v1793 = vsel %vm378, %v1763, 0
      %v1796 = vsel %vm378, %v1764, 0
      %v1799 = vsel %vm378, %v1765, 0
      %1801 = vmatpush.msra.mxu0 0.0
      %1802 = vmatpush.msra.mxu0 0.0
      %1803 = vmatpush.msra.mxu0 0.0
      %1804 = vmatpush.msra.mxu0 0.0
      %1805 = vmatpush.msra.mxu0 0.0
      %1806 = vmatpush.msra.mxu0 0.0
      %1807 = vmatpush.msra.mxu0 0.0
      %1808 = vmatpush.msra.mxu0 0.0
      %1809 = vmatpush.msra.mxu0 0.0
      %1810 = vmatpush.msra.mxu0 0.0
      %1811 = vmatpush.msra.mxu0 0.0
      %1812 = vmatpush.msra.mxu0 0.0
      %1813 = vmatpush.msra.mxu0 0.0
      %1814 = vmatpush.msra.mxu0 0.0
      %1815 = vmatpush.msra.mxu0 %v1776
      %1816 = vmatpush.msra.mxu0 %v1775
      %1817 = vmatmul.f32.gmra.mxu0 %v1778
      %v1818 = vpop.f32.mrf.mxu0
      %v1819 = vadd.f32 0.0, %v1818
      %1820 = vmatmul.f32.gmra.mxu0 %v1781
      %v1821 = vpop.f32.mrf.mxu0
      %v1822 = vadd.f32 0.0, %v1821
      %1823 = vmatmul.f32.gmra.mxu0 %v1784
      %v1824 = vpop.f32.mrf.mxu0
      %v1825 = vadd.f32 0.0, %v1824
      %1826 = vmatmul.f32.gmra.mxu0 %v1787
      %v1827 = vpop.f32.mrf.mxu0
      %v1828 = vadd.f32 0.0, %v1827
      %1829 = vmatmul.f32.gmra.mxu0 %v1790
      %v1830 = vpop.f32.mrf.mxu0
      %v1831 = vadd.f32 0.0, %v1830
      %1832 = vmatmul.f32.gmra.mxu0 %v1793
      %v1833 = vpop.f32.mrf.mxu0
      %v1834 = vadd.f32 0.0, %v1833
      %1835 = vmatmul.f32.gmra.mxu0 %v1796
      %v1836 = vpop.f32.mrf.mxu0
      %v1837 = vadd.f32 0.0, %v1836
      %1838 = vmatmul.f32.gmra.mxu0 %v1799
      %v1839 = vpop.f32.mrf.mxu0
      %v1840 = vadd.f32 0.0, %v1839
      %1841 = vdwg.mxu0
      %v1842 = vadd.f32 %v1750, %v1819
      %v1843 = vadd.f32 %v1751, %v1822
      %v1844 = vadd.f32 %v1752, %v1825
      %v1845 = vadd.f32 %v1753, %v1828
      %v1846 = vadd.f32 %v1754, %v1831
      %v1847 = vadd.f32 %v1755, %v1834
      %v1848 = vadd.f32 %v1756, %v1837
      %v1849 = vadd.f32 %v1757, %v1840
      %s1850 = scalar_lea.vmem %s5, 128
      %v1851 = vld [vmem:[%s1850] sm:$0xff]
      %v1852 = vld [vmem:[%s1850 + $0x8] sm:$0xff]
      %v1854 = vsel %vm378, %v1766, 0
      %v1857 = vsel %vm378, %v1767, 0
      %v1860 = vsel %vm378, %v1768, 0
      %v1863 = vsel %vm378, %v1769, 0
      %v1866 = vsel %vm378, %v1770, 0
      %v1869 = vsel %vm378, %v1771, 0
      %v1872 = vsel %vm378, %v1772, 0
      %v1875 = vsel %vm378, %v1773, 0
      %1877 = vmatpush.msra.mxu0 0.0
      %1878 = vmatpush.msra.mxu0 0.0
      %1879 = vmatpush.msra.mxu0 0.0
      %1880 = vmatpush.msra.mxu0 0.0
      %1881 = vmatpush.msra.mxu0 0.0
      %1882 = vmatpush.msra.mxu0 0.0
      %1883 = vmatpush.msra.mxu0 0.0
      %1884 = vmatpush.msra.mxu0 0.0
      %1885 = vmatpush.msra.mxu0 0.0
      %1886 = vmatpush.msra.mxu0 0.0
      %1887 = vmatpush.msra.mxu0 0.0
      %1888 = vmatpush.msra.mxu0 0.0
      %1889 = vmatpush.msra.mxu0 0.0
      %1890 = vmatpush.msra.mxu0 0.0
      %1891 = vmatpush.msra.mxu0 %v1852
      %1892 = vmatpush.msra.mxu0 %v1851
      %1893 = vmatmul.f32.gmra.mxu0 %v1854
      %v1894 = vpop.f32.mrf.mxu0
      %v1895 = vadd.f32 0.0, %v1894
      %1896 = vmatmul.f32.gmra.mxu0 %v1857
      %v1897 = vpop.f32.mrf.mxu0
      %v1898 = vadd.f32 0.0, %v1897
      %1899 = vmatmul.f32.gmra.mxu0 %v1860
      %v1900 = vpop.f32.mrf.mxu0
      %v1901 = vadd.f32 0.0, %v1900
      %1902 = vmatmul.f32.gmra.mxu0 %v1863
      %v1903 = vpop.f32.mrf.mxu0
      %v1904 = vadd.f32 0.0, %v1903
      %1905 = vmatmul.f32.gmra.mxu0 %v1866
      %v1906 = vpop.f32.mrf.mxu0
      %v1907 = vadd.f32 0.0, %v1906
      %1908 = vmatmul.f32.gmra.mxu0 %v1869
      %v1909 = vpop.f32.mrf.mxu0
      %v1910 = vadd.f32 0.0, %v1909
      %1911 = vmatmul.f32.gmra.mxu0 %v1872
      %v1912 = vpop.f32.mrf.mxu0
      %v1913 = vadd.f32 0.0, %v1912
      %1914 = vmatmul.f32.gmra.mxu0 %v1875
      %v1915 = vpop.f32.mrf.mxu0
      %v1916 = vadd.f32 0.0, %v1915
      %1917 = vdwg.mxu0
      %v1918 = vadd.f32 %v1842, %v1895
      %v1919 = vadd.f32 %v1843, %v1898
      %v1920 = vadd.f32 %v1844, %v1901
      %v1921 = vadd.f32 %v1845, %v1904
      %v1922 = vadd.f32 %v1846, %v1907
      %v1923 = vadd.f32 %v1847, %v1910
      %v1924 = vadd.f32 %v1848, %v1913
      %v1925 = vadd.f32 %v1849, %v1916
      %v1926 = vmax.f32 %v1918, 0.0
      %v1927 = vmax.f32 %v1919, 0.0
      %v1928 = vmax.f32 %v1920, 0.0
      %v1929 = vmax.f32 %v1921, 0.0
      %v1930 = vmax.f32 %v1922, 0.0
      %v1931 = vmax.f32 %v1923, 0.0
      %v1932 = vmax.f32 %v1924, 0.0
      %v1933 = vmax.f32 %v1925, 0.0
      %1934 = vst.msk [vmem:[%s298] sm:$0xff] %vm378, %v1926
      %1935 = vst.msk [vmem:[%s298 + $0x8] sm:$0xff] %vm378, %v1927
      %1936 = vst.msk [vmem:[%s298 + $0x10] sm:$0xff] %vm378, %v1928
      %1937 = vst.msk [vmem:[%s298 + $0x18] sm:$0xff] %vm378, %v1929
      %1938 = vst.msk [vmem:[%s298 + $0x20] sm:$0xff] %vm378, %v1930
      %1939 = vst.msk [vmem:[%s298 + $0x28] sm:$0xff] %vm378, %v1931
      %1940 = vst.msk [vmem:[%s298 + $0x30] sm:$0xff] %vm378, %v1932
      %1941 = vst.msk [vmem:[%s298 + $0x38] sm:$0xff] %vm378, %v1933
      %p1942 = scmp.lt.s32.totalorder %s18, 1
      %s1943 = scalar_select %p1942, %s18, 1
      %s1944 = smul.addr %s1943, 8
      %s1945 = smul.addr %s1944, 8
      %s1946 = scalar_lea.vmem %s7, %s1945
      // Predicated region
      $region49: #{decoder_block_forward.1} parent=47 // pred_check
        %p1947 = pneg %p193
      $region50: #{decoder_block_forward.1} parent=47 // pred_check_branch
        %1949 = sbr.rel (%p1947) target = $region52
      $region51: #{decoder_block_forward.1} parent=47 // pred_region
        _
      $region52: #{decoder_block_forward.1} parent=47 // pred_fallthru
        _
    $region48: #{decoder_block_forward.1} parent=5 // pred_fallthru
      _
    %p1950 = scmp.le.s32.totalorder 2, %s13
    // Predicated region
    $region53: #{decoder_block_forward.1} parent=5 // pred_check
      %p1951 = pneg %p1950
    $region54: #{decoder_block_forward.1} parent=5 // pred_check_branch
      %1953 = sbr.rel (%p1951) target = $region56
    $region55: #{decoder_block_forward.1} parent=5 // pred_region
      %s1954 = ssub.s32 %s13, 2
      // Predicated region
      $region57: #{decoder_block_forward.1} parent=55 // pred_check
        %p1955 = pneg %p199
      $region58: #{decoder_block_forward.1} parent=55 // pred_check_branch
        %1957 = sbr.rel (%p1955) target = $region60
      $region59: #{decoder_block_forward.1} parent=55 // pred_region
        %p1958 = scmp.lt.s32.totalorder %s19, 1
        %s1959 = scalar_select %p1958, %s19, 1
        %s1960 = smul.addr %s1959, 8
        %s1961 = smul.addr %s1960, 8
        %s1962 = scalar_lea.vmem %s7, %s1961
      $region60: #{decoder_block_forward.1} parent=55 // pred_fallthru
        _
    $region56: #{decoder_block_forward.1} parent=5 // pred_fallthru
      _
  $region6: #{decoder_block_forward.1} parent=0 // loop_footer
    %s17 = sadd.s32 1, %s13
  $region7: #{decoder_block_forward.1} parent=0 // loop_footer_branch
    %12 = sbr.rel target = $region3
  $region8: #{decoder_block_forward.1} parent=0 // loop_exit
    _

</llo_original>
